<compile_context>
chip_gen: v6e
topology: v6e:2x2x1
jax: 0.10.0
libtpu: 0.0.40
codegen_flags: <defaults>
</compile_context>

<pallas_src>
import jax
import jax.numpy as jnp
from jax.experimental import pallas as pl
from jax.experimental.pallas import tpu as pltpu


def _vmem():
    # whole-array block resident in VMEM (every operand here is tiny)
    return pl.BlockSpec(memory_space=pltpu.MemorySpace.VMEM)


def _rup(n, m):
    return ((n + m - 1) // m) * m


# ---------------------------------------------------------------------------
# Fused kernel
# ---------------------------------------------------------------------------
def _make_kernel(cfg):
    batch = cfg["batch"]
    stages = cfg["stages"]
    n_stage = len(stages)
    n_lin_rest = 3  # lin2, lin3, lin4 (lin1 is folded with the flatten)

    def kernel(*refs):
        i = 0
        x_ref = refs[i]; i += 1
        conv_w, conv_b, sel_e, sel_o = [], [], [], []
        for _ in range(n_stage):
            conv_w.append(refs[i]); conv_b.append(refs[i + 1])
            sel_e.append(refs[i + 2]); sel_o.append(refs[i + 3]); i += 4
        w1_ref = refs[i]; b1_ref = refs[i + 1]; i += 2
        mlp_w, mlp_b = [], []
        for _ in range(n_lin_rest):
            mlp_w.append(refs[i]); mlp_b.append(refs[i + 1]); i += 2
        out_ref = refs[i]; i += 1
        p_scr = [refs[i + s] for s in range(n_stage - 1)]; i += n_stage - 1

        # Zero ONLY the halo rows of the inter-stage scratch; they are read as
        # the 'same' zero padding by the next stage's tap slices.
        for s in range(1, n_stage):
            st = stages[s]
            pad = st["k"] // 2
            z = jnp.zeros((batch, pad, st["in_lanes"]), jnp.bfloat16)
            p_scr[s - 1][:, pl.ds(0, pad), :] = z
            p_scr[s - 1][:, pl.ds(pad + st["hin"], pad), :] = z

        hmax = None
        for s, st in enumerate(stages):
            hin, k, cout = st["hin"], st["k"], st["cout"]
            in_lanes, out_lanes = st["in_lanes"], st["out_lanes"]
            bh = batch * hin
            src = x_ref if s == 0 else p_scr[s - 1]

            # ---- conv ('same', stride 1), batched over the whole mini-batch:
            # row-shifted tap slices against structured weights (im2col,
            # W zero-padding and pooled-column skipping folded in).
            taps = [src[:, pl.ds(di, hin), :] for di in range(k)]
            if in_lanes % 128 == 0:
                # fuse the k taps into a single matmul (K = k * in_lanes)
                lhs = jnp.concatenate(taps, axis=-1).reshape(bh, k * in_lanes)
                acc = jnp.dot(lhs, conv_w[s][...],
                              preferred_element_type=jnp.float32)
            else:
                acc = jnp.zeros((bh, out_lanes), jnp.float32)
                for di in range(k):
                    acc = acc + jnp.dot(
                        taps[di].reshape(bh, in_lanes),
                        conv_w[s][pl.ds(di * in_lanes, in_lanes), :],
                        preferred_element_type=jnp.float32)
            acc = jnp.maximum(acc + conv_b[s][...], 0.0)

            # ---- 2x2 max-pool, fully vectorized:
            #  W direction: lane roll by Cout + elementwise max.  Odd output
            #  column groups (incl. the wrapped last one) hold garbage that is
            #  always multiplied by zero weights downstream.
            wmax = jnp.maximum(
                acc, pltpu.roll(acc, shift=out_lanes - cout, axis=1))
            wmax = wmax.astype(jnp.bfloat16)
            #  H direction: exact 0/1 even/odd row-selection matmuls + max
            #  -> [B*hin//2, out_lanes]; no per-row masked loads/stores.
            hmax = jnp.maximum(
                jnp.dot(sel_e[s][...], wmax, preferred_element_type=jnp.float32),
                jnp.dot(sel_o[s][...], wmax, preferred_element_type=jnp.float32),
            ).astype(jnp.bfloat16)

            if s + 1 < n_stage:
                pad_n = stages[s + 1]["k"] // 2
                p_scr[s][:, pl.ds(pad_n, hin // 2), :] = hmax.reshape(
                    batch, hin // 2, out_lanes)

        # ---- flatten the (un-W-compacted) last pooled map into a lane-dense
        # [B, h_half*out_lanes] LHS (static slices + 128-aligned lane concats
        # only) and run FC1 as ONE batched matmul.  Dropout is identity.
        h_half = stages[-1]["hin"] // 2
        rows = []
        for b in range(batch):
            pieces = [hmax[b * h_half + h:b * h_half + h + 1, :]
                      for h in range(h_half)]
            rows.append(jnp.concatenate(pieces, axis=-1))   # [1, h_half*lanes]
        fc1_lhs = jnp.concatenate(rows, axis=0)             # [B, h_half*lanes]

        x = jnp.dot(fc1_lhs, w1_ref[...], preferred_element_type=jnp.float32)
        x = jnp.maximum(x + b1_ref[...], 0.0)
        for j in range(n_lin_rest):
            x = jnp.dot(x.astype(jnp.bfloat16), mlp_w[j][...],
                        preferred_element_type=jnp.float32) + mlp_b[j][...]
            if j < n_lin_rest - 1:
                x = jnp.maximum(x, 0.0)
        out_ref[...] = jnp.tanh(x) * 2.0

    return kernel


# ---------------------------------------------------------------------------
# Wrapper-side (one-time) parameter folding
# ---------------------------------------------------------------------------
def _structured_conv_weights(wconv, bias, win, uncomp):
    """wconv: [Cout,Cin,k,k] -> ([k*uncomp*win*Cin, win*Cout] bf16, [1,win*Cout] f32)."""
    cout, cin, k, _ = wconv.shape
    pad = k // 2
    blocks = []
    for di in range(k):
        m = jnp.zeros((win * uncomp * cin, win * cout), jnp.float32)
        for dj in range(k):
            tap_t = wconv[:, :, di, dj].T.astype(jnp.float32)        # [cin, cout]
            if uncomp > 1:
                tap_t = jnp.concatenate(
                    [tap_t, jnp.zeros(((uncomp - 1) * cin, cout), jnp.float32)],
                    axis=0)
            # sel[w_in, w_out] = 1 iff w_in == w_out + dj - pad  (zero pad in W)
            sel = jnp.eye(win, k=pad - dj, dtype=jnp.float32)
            m = m + jnp.kron(sel, tap_t)
        blocks.append(m)
    w = jnp.concatenate(blocks, axis=0).astype(jnp.bfloat16)  # taps stacked on K
    b = jnp.tile(bias.astype(jnp.float32), win)[None, :]      # [1, win*cout]
    return w, b


def _sel_matrices(rows_in):
    """Exact 0/1 matrices selecting even / odd source rows (H-direction pool)."""
    rows_out = rows_in // 2
    idx = jnp.arange(rows_out)
    e = jnp.zeros((rows_out, rows_in), jnp.float32).at[idx, 2 * idx].set(1.0)
    o = jnp.zeros((rows_out, rows_in), jnp.float32).at[idx, 2 * idx + 1].set(1.0)
    return e.astype(jnp.bfloat16), o.astype(jnp.bfloat16)


def _fc1_folded_weight(w1, h_half, w_half, c_last, f1_pad):
    """Fold NCHW-flatten + W-downsample selection into the Linear1 weight (2-D)."""
    flat, f1 = w1.shape
    w1r = w1.reshape(c_last, h_half, w_half, f1)          # torch flatten: (c,h,w)
    t = jnp.transpose(w1r, (1, 2, 0, 3))                  # [h, w, c, f]
    big = jnp.zeros((h_half, 2 * w_half, c_last, f1_pad), jnp.float32)
    big = big.at[:, 0::2, :, :f1].set(t)                  # even (valid) w lanes
    return big.reshape(h_half * 2 * w_half * c_last, f1_pad).astype(jnp.bfloat16)


def _pad_mat(w, rows, cols):
    out = jnp.zeros((rows, cols), jnp.float32)
    return out.at[: w.shape[0], : w.shape[1]].set(w).astype(jnp.bfloat16)


def _pad_bias(b, cols):
    return jnp.zeros((1, cols), jnp.float32).at[0, : b.shape[0]].set(b)


def make_rotation_regressor(params, *, batch, in_channels, img_h, img_w,
                            kernel_sizes, pooling, lin_features):
    conv_params = params["conv"]
    lin_params = params["lin"]
    n_stage = len(conv_params)

    # static stage geometry
    stages = []
    hin, win, cin = img_h, img_w, in_channels
    for i, ((wc, _), k, p) in enumerate(zip(conv_params, kernel_sizes, pooling)):
        cout = wc.shape[0]
        assert p == 2, "TODO(synk): only 2x2 max-pooling is lowered here"
        assert k % 2 == 1, "even kernels need asymmetric 'same' padding"
        assert hin % 2 == 0 and win % 2 == 0
        uncomp = 1 if i == 0 else 2
        stages.append(dict(hin=hin, win=win, cin=cin, cout=cout, k=k,
                           uncomp=uncomp,
                           in_lanes=win * uncomp * cin,
                           out_lanes=win * cout))
        hin, win, cin = hin // 2, win // 2, cout
    h_half, w_half, c_last = hin, win, cin
    flat_dim = c_last * h_half * w_half
    assert lin_params[0][0].shape[0] == flat_dim

    f1_pad = _rup(lin_features[0], 128)
    f2_pad = _rup(lin_features[1], 128)
    f3_pad = _rup(lin_features[2], 128)
    out_pad = 128

    # fold all parameters into MXU-friendly structured / padded bf16 matrices
    fused_args = []
    for (wc, bc), st in zip(conv_params, stages):
        ww, bb = _structured_conv_weights(wc, bc, st["win"], st["uncomp"])
        se, so = _sel_matrices(batch * st["hin"])
        fused_args += [ww, bb, se, so]
    fused_args += [
        _fc1_folded_weight(lin_params[0][0], h_half, w_half, c_last, f1_pad),
        _pad_bias(lin_params[0][1], f1_pad),
        _pad_mat(lin_params[1][0], f1_pad, f2_pad), _pad_bias(lin_params[1][1], f2_pad),
        _pad_mat(lin_params[2][0], f2_pad, f3_pad), _pad_bias(lin_params[2][1], f3_pad),
        _pad_mat(lin_params[3][0], f3_pad, out_pad), _pad_bias(lin_params[3][1], out_pad),
    ]

    kernel = _make_kernel(dict(batch=batch, stages=stages))

    # inter-stage pooled-map scratch (bf16, 128-lane dense, halo rows included)
    scratch = [pltpu.VMEM(
        (batch, st["hin"] + 2 * (st["k"] // 2), st["in_lanes"]), jnp.bfloat16)
        for st in stages[1:]]

    pad1 = kernel_sizes[0] // 2
    x_bytes = batch * (img_h + 2 * pad1) * img_w * in_channels * 2
    scr_bytes = sum(batch * (st["hin"] + 2 * (st["k"] // 2)) * st["in_lanes"] * 2
                    for st in stages[1:])
    arg_bytes = sum(int(a.size) * a.dtype.itemsize for a in fused_args)
    out_bytes = batch * out_pad * 4
    vmem_limit = int(min(96 << 20,
                         max(8 << 20,
                             4 * (x_bytes + scr_bytes + arg_bytes + out_bytes))))

    call = pl.pallas_call(
        kernel,
        out_shape=jax.ShapeDtypeStruct((batch, out_pad), jnp.float32),
        in_specs=[_vmem() for _ in range(1 + len(fused_args))],
        out_specs=_vmem(),
        scratch_shapes=scratch,
        compiler_params=pltpu.CompilerParams(vmem_limit_bytes=vmem_limit),
    )

    @jax.jit
    def _run(x, *fargs):
        # one-time NCHW -> (h-padded, bf16) row-major NHWC layout at the boundary
        xh = jnp.transpose(x, (0, 2, 3, 1)).astype(jnp.bfloat16)
        xh = jnp.pad(xh, ((0, 0), (pad1, pad1), (0, 0), (0, 0)))
        xin = xh.reshape(batch, img_h + 2 * pad1, img_w * in_channels)
        return call(xin, *fargs)[:, :2]

    def forward(x):
        return _run(x, *fused_args)

    return forward


# ---------------------------------------------------------------------------
# Parameter init (PyTorch-default-style) and pure-JAX f32 reference
# ---------------------------------------------------------------------------
def init_params(key, in_channels, conv_features, kernel_sizes, lin_features,
                flat_dim):
    params = {"conv": [], "lin": []}
    cin = in_channels
    for cout, k in zip(conv_features, kernel_sizes):
        key, kw, kb = jax.random.split(key, 3)
        bound = 1.0 / jnp.sqrt(cin * k * k)
        w = jax.random.uniform(kw, (cout, cin, k, k), jnp.float32, -bound, bound)
        b = jax.random.uniform(kb, (cout,), jnp.float32, -bound, bound)
        params["conv"].append((w, b))
        cin = cout

    dims = [flat_dim, lin_features[0], lin_features[1], lin_features[2], 2]
    for d_in, d_out in zip(dims[:-1], dims[1:]):
        key, kw, kb = jax.random.split(key, 3)
        bound = 1.0 / jnp.sqrt(d_in)
        w = jax.random.uniform(kw, (d_in, d_out), jnp.float32, -bound, bound)
        b = jax.random.uniform(kb, (d_out,), jnp.float32, -bound, bound)
        params["lin"].append((w, b))
    return params


def reference_forward(x, params, kernel_sizes, pooling):
    h = x.astype(jnp.float32)
    for (w, b), k, p in zip(params["conv"], kernel_sizes, pooling):
        h = jax.lax.conv_general_dilated(
            h, w, (1, 1), "SAME", dimension_numbers=("NCHW", "OIHW", "NCHW"))
        h = jnp.maximum(h + b[None, :, None, None], 0.0)
        B_, C_, H_, W_ = h.shape
        h = h.reshape(B_, C_, H_ // p, p, W_ // p, p).max(axis=(3, 5))
    h = h.reshape(h.shape[0], -1)
    n_lin = len(params["lin"])
    for i, (w, b) in enumerate(params["lin"]):
        h = h @ w + b
        if i < n_lin - 1:
            h = jnp.maximum(h, 0.0)
    return jnp.tanh(h) * 2.0


# ---------------------------------------------------------------------------
if __name__ == "__main__":
    batch, in_channels, img_h, img_w = 2, 4, 16, 16
    conv_features = [8, 16]
    kernel_sizes = [3, 3]
    pooling = [2, 2]
    lin_features = [64, 32, 16]

    pool_total = 1
    for p in pooling:
        pool_total *= p
    flat_dim = conv_features[-1] * (img_h // pool_total) * (img_w // pool_total)

    key = jax.random.PRNGKey(0)
    key, kx = jax.random.split(key)
    x = jax.random.normal(kx, (batch, in_channels, img_h, img_w), jnp.float32)
    params = init_params(key, in_channels, conv_features, kernel_sizes,
                         lin_features, flat_dim)

    fwd = make_rotation_regressor(
        params, batch=batch, in_channels=in_channels, img_h=img_h, img_w=img_w,
        kernel_sizes=kernel_sizes, pooling=pooling, lin_features=lin_features)

    out = jax.block_until_ready(fwd(x))
    ref = jax.block_until_ready(
        reference_forward(x, params, kernel_sizes, pooling))

    assert out.shape == (batch, 2), out.shape
    assert bool(jnp.all(jnp.abs(out) <= 2.0)), "tanh*2 range violated"
    err = float(jnp.max(jnp.abs(out - ref)))
    assert err < 5e-2, f"mismatch vs f32 reference: {err}"
    print("KERNEL_OK")
</pallas_src>

<mosaic_0001>
module attributes {stable_mosaic.version = 11 : i64} {
  func.func @kernel(%arg0: memref<2x18x64xbf16, #tpu.memory_space<vmem>>, %arg1: memref<192x128xbf16, #tpu.memory_space<vmem>>, %arg2: memref<1x128xf32, #tpu.memory_space<vmem>>, %arg3: memref<16x32xbf16, #tpu.memory_space<vmem>>, %arg4: memref<16x32xbf16, #tpu.memory_space<vmem>>, %arg5: memref<384x128xbf16, #tpu.memory_space<vmem>>, %arg6: memref<1x128xf32, #tpu.memory_space<vmem>>, %arg7: memref<8x16xbf16, #tpu.memory_space<vmem>>, %arg8: memref<8x16xbf16, #tpu.memory_space<vmem>>, %arg9: memref<512x128xbf16, #tpu.memory_space<vmem>>, %arg10: memref<1x128xf32, #tpu.memory_space<vmem>>, %arg11: memref<128x128xbf16, #tpu.memory_space<vmem>>, %arg12: memref<1x128xf32, #tpu.memory_space<vmem>>, %arg13: memref<128x128xbf16, #tpu.memory_space<vmem>>, %arg14: memref<1x128xf32, #tpu.memory_space<vmem>>, %arg15: memref<128x128xbf16, #tpu.memory_space<vmem>>, %arg16: memref<1x128xf32, #tpu.memory_space<vmem>>, %arg17: memref<2x128xf32, #tpu.memory_space<vmem>>, %arg18: memref<2x10x128xbf16, #tpu.memory_space<vmem>>) attributes {dimension_semantics = [], scalar_prefetch = 0 : i64, scratch_operands = 1 : i64, tpu.core_type = #tpu.core_type<tc>} {
    %cst = arith.constant 0.000000e+00 : bf16
    %0 = vector.broadcast %cst : bf16 to vector<2x1x128xbf16>
    %c0 = arith.constant 0 : index
    %c0_0 = arith.constant 0 : index
    %c0_1 = arith.constant 0 : index
    %1 = vector.load %arg18[%c0, %c0_0, %c0_1] : memref<2x10x128xbf16, #tpu.memory_space<vmem>>, vector<2x1x128xbf16>
    tpu.vector_store %arg18[%c0, %c0_0, %c0_1], %0 {strides = array<i32>} : memref<2x10x128xbf16, #tpu.memory_space<vmem>>, vector<2x1x128xbf16>,
    %c0_2 = arith.constant 0 : index
    %c9 = arith.constant 9 : index
    %c0_3 = arith.constant 0 : index
    %2 = vector.load %arg18[%c0_2, %c9, %c0_3] : memref<2x10x128xbf16, #tpu.memory_space<vmem>>, vector<2x1x128xbf16>
    tpu.vector_store %arg18[%c0_2, %c9, %c0_3], %0 {strides = array<i32>} : memref<2x10x128xbf16, #tpu.memory_space<vmem>>, vector<2x1x128xbf16>,
    %c0_4 = arith.constant 0 : index
    %c0_5 = arith.constant 0 : index
    %c0_6 = arith.constant 0 : index
    %3 = vector.load %arg0[%c0_4, %c0_5, %c0_6] : memref<2x18x64xbf16, #tpu.memory_space<vmem>>, vector<2x16x64xbf16>
    %c0_7 = arith.constant 0 : index
    %c1 = arith.constant 1 : index
    %c0_8 = arith.constant 0 : index
    %4 = vector.load %arg0[%c0_7, %c1, %c0_8] : memref<2x18x64xbf16, #tpu.memory_space<vmem>>, vector<2x16x64xbf16>
    %c0_9 = arith.constant 0 : index
    %c2 = arith.constant 2 : index
    %c0_10 = arith.constant 0 : index
    %5 = vector.load %arg0[%c0_9, %c2, %c0_10] : memref<2x18x64xbf16, #tpu.memory_space<vmem>>, vector<2x16x64xbf16>
    %cst_11 = arith.constant 0.000000e+00 : f32
    %6 = vector.broadcast %cst_11 : f32 to vector<32x128xf32>
    %7 = vector.shape_cast %3 : vector<2x16x64xbf16> to vector<32x64xbf16>
    %c0_12 = arith.constant 0 : index
    %c0_13 = arith.constant 0 : index
    %8 = vector.load %arg1[%c0_12, %c0_13] : memref<192x128xbf16, #tpu.memory_space<vmem>>, vector<64x128xbf16>
    %cst_14 = arith.constant dense<0.000000e+00> : vector<32x128xf32>
    %9 = tpu.matmul %7, %8, %cst_14 {dimension_numbers = #tpu.dot_dimension_numbers<[1], [0], [0], [1], [0, 0, 1, 1], [], []>} : vector<32x64xbf16>, vector<64x128xbf16>, vector<32x128xf32> -> vector<32x128xf32>
    %10 = arith.addf %6, %9 : vector<32x128xf32>
    %11 = vector.shape_cast %4 : vector<2x16x64xbf16> to vector<32x64xbf16>
    %c64 = arith.constant 64 : index
    %c0_15 = arith.constant 0 : index
    %12 = vector.load %arg1[%c64, %c0_15] : memref<192x128xbf16, #tpu.memory_space<vmem>>, vector<64x128xbf16>
    %cst_16 = arith.constant dense<0.000000e+00> : vector<32x128xf32>
    %13 = tpu.matmul %11, %12, %cst_16 {dimension_numbers = #tpu.dot_dimension_numbers<[1], [0], [0], [1], [0, 0, 1, 1], [], []>} : vector<32x64xbf16>, vector<64x128xbf16>, vector<32x128xf32> -> vector<32x128xf32>
    %14 = arith.addf %10, %13 : vector<32x128xf32>
    %15 = vector.shape_cast %5 : vector<2x16x64xbf16> to vector<32x64xbf16>
    %c128 = arith.constant 128 : index
    %c0_17 = arith.constant 0 : index
    %16 = vector.load %arg1[%c128, %c0_17] : memref<192x128xbf16, #tpu.memory_space<vmem>>, vector<64x128xbf16>
    %cst_18 = arith.constant dense<0.000000e+00> : vector<32x128xf32>
    %17 = tpu.matmul %15, %16, %cst_18 {dimension_numbers = #tpu.dot_dimension_numbers<[1], [0], [0], [1], [0, 0, 1, 1], [], []>} : vector<32x64xbf16>, vector<64x128xbf16>, vector<32x128xf32> -> vector<32x128xf32>
    %18 = arith.addf %14, %17 : vector<32x128xf32>
    %c0_19 = arith.constant 0 : index
    %c0_20 = arith.constant 0 : index
    %19 = vector.load %arg2[%c0_19, %c0_20] : memref<1x128xf32, #tpu.memory_space<vmem>>, vector<1x128xf32>
    %20 = vector.broadcast %19 : vector<1x128xf32> to vector<32x128xf32>
    %21 = arith.addf %18, %20 : vector<32x128xf32>
    %cst_21 = arith.constant 0.000000e+00 : f32
    %22 = vector.broadcast %cst_21 : f32 to vector<32x128xf32>
    %23 = arith.maximumf %21, %22 : vector<32x128xf32>
    %c120_i32 = arith.constant 120 : i32
    %24 = tpu.dynamic_rotate %23 by %c120_i32 dim 1 : vector<32x128xf32>, i32 -> vector<32x128xf32>
    %25 = arith.maximumf %23, %24 : vector<32x128xf32>
    %26 = arith.truncf %25 : vector<32x128xf32> to vector<32x128xbf16>
    %c0_22 = arith.constant 0 : index
    %c0_23 = arith.constant 0 : index
    %27 = vector.load %arg3[%c0_22, %c0_23] : memref<16x32xbf16, #tpu.memory_space<vmem>>, vector<16x32xbf16>
    %cst_24 = arith.constant dense<0.000000e+00> : vector<16x128xf32>
    %28 = tpu.matmul %27, %26, %cst_24 {dimension_numbers = #tpu.dot_dimension_numbers<[1], [0], [0], [1], [0, 0, 1, 1], [], []>} : vector<16x32xbf16>, vector<32x128xbf16>, vector<16x128xf32> -> vector<16x128xf32>
    %c0_25 = arith.constant 0 : index
    %c0_26 = arith.constant 0 : index
    %29 = vector.load %arg4[%c0_25, %c0_26] : memref<16x32xbf16, #tpu.memory_space<vmem>>, vector<16x32xbf16>
    %cst_27 = arith.constant dense<0.000000e+00> : vector<16x128xf32>
    %30 = tpu.matmul %29, %26, %cst_27 {dimension_numbers = #tpu.dot_dimension_numbers<[1], [0], [0], [1], [0, 0, 1, 1], [], []>} : vector<16x32xbf16>, vector<32x128xbf16>, vector<16x128xf32> -> vector<16x128xf32>
    %31 = arith.maximumf %28, %30 : vector<16x128xf32>
    %32 = arith.truncf %31 : vector<16x128xf32> to vector<16x128xbf16>
    %33 = vector.shape_cast %32 : vector<16x128xbf16> to vector<2x8x128xbf16>
    %c0_28 = arith.constant 0 : index
    %c1_29 = arith.constant 1 : index
    %c0_30 = arith.constant 0 : index
    %34 = vector.load %arg18[%c0_28, %c1_29, %c0_30] : memref<2x10x128xbf16, #tpu.memory_space<vmem>>, vector<2x8x128xbf16>
    tpu.vector_store %arg18[%c0_28, %c1_29, %c0_30], %33 {strides = array<i32>} : memref<2x10x128xbf16, #tpu.memory_space<vmem>>, vector<2x8x128xbf16>,
    %c0_31 = arith.constant 0 : index
    %c0_32 = arith.constant 0 : index
    %c0_33 = arith.constant 0 : index
    %35 = vector.load %arg18[%c0_31, %c0_32, %c0_33] : memref<2x10x128xbf16, #tpu.memory_space<vmem>>, vector<2x8x128xbf16>
    %c0_34 = arith.constant 0 : index
    %c1_35 = arith.constant 1 : index
    %c0_36 = arith.constant 0 : index
    %36 = vector.load %arg18[%c0_34, %c1_35, %c0_36] : memref<2x10x128xbf16, #tpu.memory_space<vmem>>, vector<2x8x128xbf16>
    %c0_37 = arith.constant 0 : index
    %c2_38 = arith.constant 2 : index
    %c0_39 = arith.constant 0 : index
    %37 = vector.load %arg18[%c0_37, %c2_38, %c0_39] : memref<2x10x128xbf16, #tpu.memory_space<vmem>>, vector<2x8x128xbf16>
    %38 = tpu.concatenate %35, %36, %37 in 2 : vector<2x8x128xbf16>, vector<2x8x128xbf16>, vector<2x8x128xbf16> -> vector<2x8x384xbf16>
    %39 = vector.shape_cast %38 : vector<2x8x384xbf16> to vector<16x384xbf16>
    %c0_40 = arith.constant 0 : index
    %c0_41 = arith.constant 0 : index
    %40 = vector.load %arg5[%c0_40, %c0_41] : memref<384x128xbf16, #tpu.memory_space<vmem>>, vector<384x128xbf16>
    %cst_42 = arith.constant dense<0.000000e+00> : vector<16x128xf32>
    %41 = tpu.matmul %39, %40, %cst_42 {dimension_numbers = #tpu.dot_dimension_numbers<[1], [0], [0], [1], [0, 0, 1, 1], [], []>} : vector<16x384xbf16>, vector<384x128xbf16>, vector<16x128xf32> -> vector<16x128xf32>
    %c0_43 = arith.constant 0 : index
    %c0_44 = arith.constant 0 : index
    %42 = vector.load %arg6[%c0_43, %c0_44] : memref<1x128xf32, #tpu.memory_space<vmem>>, vector<1x128xf32>
    %43 = vector.broadcast %42 : vector<1x128xf32> to vector<16x128xf32>
    %44 = arith.addf %41, %43 : vector<16x128xf32>
    %cst_45 = arith.constant 0.000000e+00 : f32
    %45 = vector.broadcast %cst_45 : f32 to vector<16x128xf32>
    %46 = arith.maximumf %44, %45 : vector<16x128xf32>
    %c112_i32 = arith.constant 112 : i32
    %47 = tpu.dynamic_rotate %46 by %c112_i32 dim 1 : vector<16x128xf32>, i32 -> vector<16x128xf32>
    %48 = arith.maximumf %46, %47 : vector<16x128xf32>
    %49 = arith.truncf %48 : vector<16x128xf32> to vector<16x128xbf16>
    %c0_46 = arith.constant 0 : index
    %c0_47 = arith.constant 0 : index
    %50 = vector.load %arg7[%c0_46, %c0_47] : memref<8x16xbf16, #tpu.memory_space<vmem>>, vector<8x16xbf16>
    %cst_48 = arith.constant dense<0.000000e+00> : vector<8x128xf32>
    %51 = tpu.matmul %50, %49, %cst_48 {dimension_numbers = #tpu.dot_dimension_numbers<[1], [0], [0], [1], [0, 0, 1, 1], [], []>} : vector<8x16xbf16>, vector<16x128xbf16>, vector<8x128xf32> -> vector<8x128xf32>
    %c0_49 = arith.constant 0 : index
    %c0_50 = arith.constant 0 : index
    %52 = vector.load %arg8[%c0_49, %c0_50] : memref<8x16xbf16, #tpu.memory_space<vmem>>, vector<8x16xbf16>
    %cst_51 = arith.constant dense<0.000000e+00> : vector<8x128xf32>
    %53 = tpu.matmul %52, %49, %cst_51 {dimension_numbers = #tpu.dot_dimension_numbers<[1], [0], [0], [1], [0, 0, 1, 1], [], []>} : vector<8x16xbf16>, vector<16x128xbf16>, vector<8x128xf32> -> vector<8x128xf32>
    %54 = arith.maximumf %51, %53 : vector<8x128xf32>
    %55 = arith.truncf %54 : vector<8x128xf32> to vector<8x128xbf16>
    %56 = vector.extract_strided_slice %55 {offsets = [0, 0], sizes = [1, 128], strides = [1, 1]} : vector<8x128xbf16> to vector<1x128xbf16>
    %57 = vector.extract_strided_slice %55 {offsets = [1, 0], sizes = [1, 128], strides = [1, 1]} : vector<8x128xbf16> to vector<1x128xbf16>
    %58 = vector.extract_strided_slice %55 {offsets = [2, 0], sizes = [1, 128], strides = [1, 1]} : vector<8x128xbf16> to vector<1x128xbf16>
    %59 = vector.extract_strided_slice %55 {offsets = [3, 0], sizes = [1, 128], strides = [1, 1]} : vector<8x128xbf16> to vector<1x128xbf16>
    %60 = tpu.concatenate %56, %57, %58, %59 in 1 : vector<1x128xbf16>, vector<1x128xbf16>, vector<1x128xbf16>, vector<1x128xbf16> -> vector<1x512xbf16>
    %61 = vector.extract_strided_slice %55 {offsets = [4, 0], sizes = [1, 128], strides = [1, 1]} : vector<8x128xbf16> to vector<1x128xbf16>
    %62 = vector.extract_strided_slice %55 {offsets = [5, 0], sizes = [1, 128], strides = [1, 1]} : vector<8x128xbf16> to vector<1x128xbf16>
    %63 = vector.extract_strided_slice %55 {offsets = [6, 0], sizes = [1, 128], strides = [1, 1]} : vector<8x128xbf16> to vector<1x128xbf16>
    %64 = vector.extract_strided_slice %55 {offsets = [7, 0], sizes = [1, 128], strides = [1, 1]} : vector<8x128xbf16> to vector<1x128xbf16>
    %65 = tpu.concatenate %61, %62, %63, %64 in 1 : vector<1x128xbf16>, vector<1x128xbf16>, vector<1x128xbf16>, vector<1x128xbf16> -> vector<1x512xbf16>
    %66 = tpu.concatenate %60, %65 in 0 : vector<1x512xbf16>, vector<1x512xbf16> -> vector<2x512xbf16>
    %c0_52 = arith.constant 0 : index
    %c0_53 = arith.constant 0 : index
    %67 = vector.load %arg9[%c0_52, %c0_53] : memref<512x128xbf16, #tpu.memory_space<vmem>>, vector<512x128xbf16>
    %cst_54 = arith.constant dense<0.000000e+00> : vector<2x128xf32>
    %68 = tpu.matmul %66, %67, %cst_54 {dimension_numbers = #tpu.dot_dimension_numbers<[1], [0], [0], [1], [0, 0, 1, 1], [], []>} : vector<2x512xbf16>, vector<512x128xbf16>, vector<2x128xf32> -> vector<2x128xf32>
    %c0_55 = arith.constant 0 : index
    %c0_56 = arith.constant 0 : index
    %69 = vector.load %arg10[%c0_55, %c0_56] : memref<1x128xf32, #tpu.memory_space<vmem>>, vector<1x128xf32>
    %70 = vector.broadcast %69 : vector<1x128xf32> to vector<2x128xf32>
    %71 = arith.addf %68, %70 : vector<2x128xf32>
    %cst_57 = arith.constant 0.000000e+00 : f32
    %72 = vector.broadcast %cst_57 : f32 to vector<2x128xf32>
    %73 = arith.maximumf %71, %72 : vector<2x128xf32>
    %74 = arith.truncf %73 : vector<2x128xf32> to vector<2x128xbf16>
    %c0_58 = arith.constant 0 : index
    %c0_59 = arith.constant 0 : index
    %75 = vector.load %arg11[%c0_58, %c0_59] : memref<128x128xbf16, #tpu.memory_space<vmem>>, vector<128x128xbf16>
    %cst_60 = arith.constant dense<0.000000e+00> : vector<2x128xf32>
    %76 = tpu.matmul %74, %75, %cst_60 {dimension_numbers = #tpu.dot_dimension_numbers<[1], [0], [0], [1], [0, 0, 1, 1], [], []>} : vector<2x128xbf16>, vector<128x128xbf16>, vector<2x128xf32> -> vector<2x128xf32>
    %c0_61 = arith.constant 0 : index
    %c0_62 = arith.constant 0 : index
    %77 = vector.load %arg12[%c0_61, %c0_62] : memref<1x128xf32, #tpu.memory_space<vmem>>, vector<1x128xf32>
    %78 = vector.broadcast %77 : vector<1x128xf32> to vector<2x128xf32>
    %79 = arith.addf %76, %78 : vector<2x128xf32>
    %cst_63 = arith.constant 0.000000e+00 : f32
    %80 = vector.broadcast %cst_63 : f32 to vector<2x128xf32>
    %81 = arith.maximumf %79, %80 : vector<2x128xf32>
    %82 = arith.truncf %81 : vector<2x128xf32> to vector<2x128xbf16>
    %c0_64 = arith.constant 0 : index
    %c0_65 = arith.constant 0 : index
    %83 = vector.load %arg13[%c0_64, %c0_65] : memref<128x128xbf16, #tpu.memory_space<vmem>>, vector<128x128xbf16>
    %cst_66 = arith.constant dense<0.000000e+00> : vector<2x128xf32>
    %84 = tpu.matmul %82, %83, %cst_66 {dimension_numbers = #tpu.dot_dimension_numbers<[1], [0], [0], [1], [0, 0, 1, 1], [], []>} : vector<2x128xbf16>, vector<128x128xbf16>, vector<2x128xf32> -> vector<2x128xf32>
    %c0_67 = arith.constant 0 : index
    %c0_68 = arith.constant 0 : index
    %85 = vector.load %arg14[%c0_67, %c0_68] : memref<1x128xf32, #tpu.memory_space<vmem>>, vector<1x128xf32>
    %86 = vector.broadcast %85 : vector<1x128xf32> to vector<2x128xf32>
    %87 = arith.addf %84, %86 : vector<2x128xf32>
    %cst_69 = arith.constant 0.000000e+00 : f32
    %88 = vector.broadcast %cst_69 : f32 to vector<2x128xf32>
    %89 = arith.maximumf %87, %88 : vector<2x128xf32>
    %90 = arith.truncf %89 : vector<2x128xf32> to vector<2x128xbf16>
    %c0_70 = arith.constant 0 : index
    %c0_71 = arith.constant 0 : index
    %91 = vector.load %arg15[%c0_70, %c0_71] : memref<128x128xbf16, #tpu.memory_space<vmem>>, vector<128x128xbf16>
    %cst_72 = arith.constant dense<0.000000e+00> : vector<2x128xf32>
    %92 = tpu.matmul %90, %91, %cst_72 {dimension_numbers = #tpu.dot_dimension_numbers<[1], [0], [0], [1], [0, 0, 1, 1], [], []>} : vector<2x128xbf16>, vector<128x128xbf16>, vector<2x128xf32> -> vector<2x128xf32>
    %c0_73 = arith.constant 0 : index
    %c0_74 = arith.constant 0 : index
    %93 = vector.load %arg16[%c0_73, %c0_74] : memref<1x128xf32, #tpu.memory_space<vmem>>, vector<1x128xf32>
    %94 = vector.broadcast %93 : vector<1x128xf32> to vector<2x128xf32>
    %95 = arith.addf %92, %94 : vector<2x128xf32>
    %96 = math.tanh %95 : vector<2x128xf32>
    %cst_75 = arith.constant 2.000000e+00 : f32
    %97 = vector.broadcast %cst_75 : f32 to vector<2x128xf32>
    %98 = arith.mulf %96, %97 : vector<2x128xf32>
    %c0_76 = arith.constant 0 : index
    %c0_77 = arith.constant 0 : index
    %99 = vector.load %arg17[%c0_76, %c0_77] : memref<2x128xf32, #tpu.memory_space<vmem>>, vector<2x128xf32>
    tpu.vector_store %arg17[%c0_76, %c0_77], %98 {strides = array<i32>} : memref<2x128xf32, #tpu.memory_space<vmem>>, vector<2x128xf32>,
    return
  }
}

</mosaic_0001>

<llo_original>
// kernel: _run.1
$region0: #{_run.1}
  #allocation0 [shape = 'u32[]', space=smem, size = 0x4, offset = 0x4, fixed_abs, tag = 'smem constant byte address 0x4 - core index']
  #allocation1 [shape = 'u32[144,128]{1,0:T(1,128)}', space=vmem, size = 0x12000, scoped, tag = 'internal scratch']
  #allocation2 [shape = 'bf16[2,10,128]{2,1,0:T(8,128)(2,1)}', space=vmem, size = 0x2000, scoped, tag = 'scratch operand']
  %s0 = inlined_call_operand.vmem [shape: bf16[2,18,64], index: 0, kind: input, shape index: {}]
  %s1 = inlined_call_operand.hbm [shape: bf16[192,128], index: 1, kind: input, shape index: {}]
  %s2 = inlined_call_operand.vmem [shape: f32[1,128], index: 2, kind: input, shape index: {}]
  %s3 = inlined_call_operand.vmem [shape: bf16[16,32], index: 3, kind: input, shape index: {}]
  %s4 = inlined_call_operand.vmem [shape: bf16[16,32], index: 4, kind: input, shape index: {}]
  %s5 = inlined_call_operand.vmem [shape: bf16[384,128], index: 5, kind: input, shape index: {}]
  %s6 = inlined_call_operand.vmem [shape: f32[1,128], index: 6, kind: input, shape index: {}]
  %s7 = inlined_call_operand.vmem [shape: bf16[8,16], index: 7, kind: input, shape index: {}]
  %s8 = inlined_call_operand.vmem [shape: bf16[8,16], index: 8, kind: input, shape index: {}]
  %s9 = inlined_call_operand.vmem [shape: bf16[512,128], index: 9, kind: input, shape index: {}]
  %s10 = inlined_call_operand.vmem [shape: f32[1,128], index: 10, kind: input, shape index: {}]
  %s11 = inlined_call_operand.vmem [shape: bf16[128,128], index: 11, kind: input, shape index: {}]
  %s12 = inlined_call_operand.vmem [shape: f32[1,128], index: 12, kind: input, shape index: {}]
  %s13 = inlined_call_operand.hbm [shape: bf16[128,128], index: 13, kind: input, shape index: {}]
  %s14 = inlined_call_operand.vmem [shape: f32[1,128], index: 14, kind: input, shape index: {}]
  %s15 = inlined_call_operand.hbm [shape: bf16[128,128], index: 15, kind: input, shape index: {}]
  %s16 = inlined_call_operand.vmem [shape: f32[1,128], index: 16, kind: input, shape index: {}]
  %s17 = inlined_call_operand.hbm [shape: f32[2,128], index: 17, kind: output, shape index: {}]
  %s18 = sld [smem:[#allocation0]]
  $region90: #{_run.1} parent=0
    _
  %s20 = ssub.s32 1, %s18
  %s21 = scalar_select 0, %s20, %s18
  $region1: #{_run.1} parent=0
    #allocation3 [shape = 'u8[49152]{0}', space=vmem, size = 0xc000, scoped, tag = 'input window, operand 1, single buffered']
    #allocation4 [shape = 's32[1]{0}', space=sflag, size = 0x4, scoped, tag = 'scoped memory for _run.1']
    #allocation5 [shape = 's32[1]{0}', space=sflag, size = 0x4, scoped, tag = 'scoped memory for _run.1']
    #allocation6 [shape = 'u8[32768]{0}', space=vmem, size = 0x8000, scoped, tag = 'input window, operand 13, single buffered']
    #allocation7 [shape = 's32[1]{0}', space=sflag, size = 0x4, scoped, tag = 'scoped memory for _run.1']
    #allocation8 [shape = 'u8[32768]{0}', space=vmem, size = 0x8000, scoped, tag = 'input window, operand 15, single buffered']
    #allocation9 [shape = 'u8[1024]{0}', space=vmem, size = 0x400, scoped, tag = 'output window, operand 0, single buffered']
    %22 = vsyncpa [#allocation4], 0
    %23 = vsyncpa [#allocation7], 0
    %24 = vsyncpa [#allocation5], 0
    // Predicated region
    $region2: #{_run.1} parent=1 // pred_check
      _
    $region3: #{_run.1} parent=1 // pred_check_branch
      %26 = sbr.rel (0) target = $region5
    $region4: #{_run.1} parent=1 // pred_region
      _
    $region5: #{_run.1} parent=1 // pred_fallthru
      _
    // Predicated region
    $region6: #{_run.1} parent=1 // pred_check
      _
    $region7: #{_run.1} parent=1 // pred_check_branch
      %28 = sbr.rel (0) target = $region9
    $region8: #{_run.1} parent=1 // pred_region
      %s30 = ssub.s32 1536, 1536
      %31 = vsyncadd [#allocation4], %s30
      %s32 = sshll.u32 [#allocation3], 4
      %s33 = int_to_ptr.vmem [resolvable:$true] %s32
      %38 = dma.hbm_to_vmem [thread:$0]  %s1, 1536, %s33, [#allocation4], 64, 64, 4
    $region9: #{_run.1} parent=1 // pred_fallthru
      _
    // Predicated region
    $region10: #{_run.1} parent=1 // pred_check
      _
    $region11: #{_run.1} parent=1 // pred_check_branch
      %40 = sbr.rel (0) target = $region13
    $region12: #{_run.1} parent=1 // pred_region
      _
    $region13: #{_run.1} parent=1 // pred_fallthru
      _
    // Predicated region
    $region14: #{_run.1} parent=1 // pred_check
      _
    $region15: #{_run.1} parent=1 // pred_check_branch
      %42 = sbr.rel (0) target = $region17
    $region16: #{_run.1} parent=1 // pred_region
      _
    $region17: #{_run.1} parent=1 // pred_fallthru
      _
    // Predicated region
    $region18: #{_run.1} parent=1 // pred_check
      _
    $region19: #{_run.1} parent=1 // pred_check_branch
      %44 = sbr.rel (0) target = $region21
    $region20: #{_run.1} parent=1 // pred_region
      _
    $region21: #{_run.1} parent=1 // pred_fallthru
      _
    // Predicated region
    $region22: #{_run.1} parent=1 // pred_check
      _
    $region23: #{_run.1} parent=1 // pred_check_branch
      %46 = sbr.rel (0) target = $region25
    $region24: #{_run.1} parent=1 // pred_region
      _
    $region25: #{_run.1} parent=1 // pred_fallthru
      _
    // Predicated region
    $region26: #{_run.1} parent=1 // pred_check
      _
    $region27: #{_run.1} parent=1 // pred_check_branch
      %48 = sbr.rel (0) target = $region29
    $region28: #{_run.1} parent=1 // pred_region
      _
    $region29: #{_run.1} parent=1 // pred_fallthru
      _
    // Predicated region
    $region30: #{_run.1} parent=1 // pred_check
      _
    $region31: #{_run.1} parent=1 // pred_check_branch
      %50 = sbr.rel (0) target = $region33
    $region32: #{_run.1} parent=1 // pred_region
      _
    $region33: #{_run.1} parent=1 // pred_fallthru
      _
    // Predicated region
    $region34: #{_run.1} parent=1 // pred_check
      _
    $region35: #{_run.1} parent=1 // pred_check_branch
      %52 = sbr.rel (0) target = $region37
    $region36: #{_run.1} parent=1 // pred_region
      _
    $region37: #{_run.1} parent=1 // pred_fallthru
      _
    // Predicated region
    $region38: #{_run.1} parent=1 // pred_check
      _
    $region39: #{_run.1} parent=1 // pred_check_branch
      %54 = sbr.rel (0) target = $region41
    $region40: #{_run.1} parent=1 // pred_region
      _
    $region41: #{_run.1} parent=1 // pred_fallthru
      _
    // Predicated region
    $region42: #{_run.1} parent=1 // pred_check
      _
    $region43: #{_run.1} parent=1 // pred_check_branch
      %56 = sbr.rel (0) target = $region45
    $region44: #{_run.1} parent=1 // pred_region
      _
    $region45: #{_run.1} parent=1 // pred_fallthru
      _
    // Predicated region
    $region46: #{_run.1} parent=1 // pred_check
      _
    $region47: #{_run.1} parent=1 // pred_check_branch
      %58 = sbr.rel (0) target = $region49
    $region48: #{_run.1} parent=1 // pred_region
      _
    $region49: #{_run.1} parent=1 // pred_fallthru
      _
    // Predicated region
    $region50: #{_run.1} parent=1 // pred_check
      _
    $region51: #{_run.1} parent=1 // pred_check_branch
      %60 = sbr.rel (0) target = $region53
    $region52: #{_run.1} parent=1 // pred_region
      _
    $region53: #{_run.1} parent=1 // pred_fallthru
      _
    // Predicated region
    $region54: #{_run.1} parent=1 // pred_check
      _
    $region55: #{_run.1} parent=1 // pred_check_branch
      %62 = sbr.rel (0) target = $region57
    $region56: #{_run.1} parent=1 // pred_region
      %s64 = ssub.s32 1024, 1024
      %65 = vsyncadd [#allocation7], %s64
      %s66 = sshll.u32 [#allocation6], 4
      %s67 = int_to_ptr.vmem [resolvable:$true] %s66
      %72 = dma.hbm_to_vmem [thread:$0]  %s13, 1024, %s67, [#allocation7], 64, 64, 4
    $region57: #{_run.1} parent=1 // pred_fallthru
      _
    // Predicated region
    $region58: #{_run.1} parent=1 // pred_check
      _
    $region59: #{_run.1} parent=1 // pred_check_branch
      %74 = sbr.rel (0) target = $region61
    $region60: #{_run.1} parent=1 // pred_region
      _
    $region61: #{_run.1} parent=1 // pred_fallthru
      _
    // Predicated region
    $region62: #{_run.1} parent=1 // pred_check
      _
    $region63: #{_run.1} parent=1 // pred_check_branch
      %76 = sbr.rel (0) target = $region65
    $region64: #{_run.1} parent=1 // pred_region
      %s78 = ssub.s32 1024, 1024
      %79 = vsyncadd [#allocation7], %s78
      %s80 = sshll.u32 [#allocation8], 4
      %s81 = int_to_ptr.vmem [resolvable:$true] %s80
      %86 = dma.hbm_to_vmem [thread:$0]  %s15, 1024, %s81, [#allocation7], 64, 64, 4
    $region65: #{_run.1} parent=1 // pred_fallthru
      _
    // Predicated region
    $region66: #{_run.1} parent=1 // pred_check
      _
    $region67: #{_run.1} parent=1 // pred_check_branch
      %88 = sbr.rel (0) target = $region69
    $region68: #{_run.1} parent=1 // pred_region
      _
    $region69: #{_run.1} parent=1 // pred_fallthru
      _
    // Predicated region
    $region70: #{_run.1} parent=1 // pred_check
      _
    $region71: #{_run.1} parent=1 // pred_check_branch
      %90 = sbr.rel (0) target = $region73
    $region72: #{_run.1} parent=1 // pred_region
      %91 = dma.done [#allocation4], 1536
    $region73: #{_run.1} parent=1 // pred_fallthru
      _
    // Predicated region
    $region74: #{_run.1} parent=1 // pred_check
      _
    $region75: #{_run.1} parent=1 // pred_check_branch
      %93 = sbr.rel (0) target = $region77
    $region76: #{_run.1} parent=1 // pred_region
      %94 = dma.done [#allocation7], 1024
    $region77: #{_run.1} parent=1 // pred_fallthru
      _
    // Predicated region
    $region78: #{_run.1} parent=1 // pred_check
      _
    $region79: #{_run.1} parent=1 // pred_check_branch
      %96 = sbr.rel (0) target = $region81
    $region80: #{_run.1} parent=1 // pred_region
      %97 = dma.done [#allocation7], 1024
    $region81: #{_run.1} parent=1 // pred_fallthru
      _
    %vm99 = vcmask 1040384
    %vm100 = vsmask.f32 256
    %vm101 = vmand %vm99, %vm100
    %v102 = vld [vmem:[#allocation2] sm:$0x1]
    %v103 = vsel %vm101, 0, %v102
    %104 = vst [vmem:[#allocation2] sm:$0x1] %v103
    %v105 = vld [vmem:[#allocation2 + $0x8] sm:$0x1]
    %v106 = vsel %vm101, 0, %v105
    %107 = vst [vmem:[#allocation2 + $0x8] sm:$0x1] %v106
    %vm108 = vsmask.f32 7938
    %vm109 = vmand %vm99, %vm108
    %v110 = vld [vmem:[#allocation2 + $0x4] sm:$0x1]
    %v111 = vsel %vm109, 0, %v110
    %112 = vst [vmem:[#allocation2 + $0x4] sm:$0x1] %v111
    %v113 = vld [vmem:[#allocation2 + $0xc] sm:$0x1]
    %v114 = vsel %vm109, 0, %v113
    %115 = vst [vmem:[#allocation2 + $0xc] sm:$0x1] %v114
    %v116 = vld [vmem:[%s0] sm:$0xf]
    %v117 = vld [vmem:[%s0 + $0x4] sm:$0xf]
    %v118 = vld [vmem:[%s0 + $0xc] sm:$0xf]
    %v119 = vld [vmem:[%s0 + $0x10] sm:$0xf]
    %v120 = vld [vmem:[%s0 + $0x8] sm:$0x1]
    %v121 = vld [vmem:[%s0 + $0x14] sm:$0x1]
    %v122 = vld [vmem:[%s0] sm:$0xe]
    %v123 = vld [vmem:[%s0 + $0xc] sm:$0xe]
    %v124 = vld [vmem:[#allocation3] sm:$0xf]
    %v125 = vld [vmem:[#allocation3 + $0x4] sm:$0xf]
    %v126 = vld [vmem:[#allocation3 + $0x8] sm:$0xf]
    %v127 = vld [vmem:[#allocation3 + $0xc] sm:$0xf]
    %v128 = vld [vmem:[#allocation3 + $0x10] sm:$0xf]
    %v129 = vld [vmem:[#allocation3 + $0x14] sm:$0xf]
    %v130 = vld [vmem:[#allocation3 + $0x18] sm:$0xf]
    %v131 = vld [vmem:[#allocation3 + $0x1c] sm:$0xf]
    %vm132 = vsmask.f32 3328
    %vm133 = vsmask.f32 7440
    %vm134 = vmor %vm132, %vm133
    %v136 = vshrl.u32 %v116, 16
    %v138 = vrot.slane %v136, 4
    %v139 = vshll.u32 %v116, 16
    %v141 = vrot.slane %v139, 5
    %v142 = vor.u32 %v138, %v141
    %v143 = vrot.slane %v142, 4
    %v145 = vshll.u32 %v117, 16
    %v147 = vrot.slane %v145, 5
    %v148 = vsel %vm134, %v143, %v147
    %v149 = vshrl.u32 %v117, 16
    %v151 = vrot.slane %v149, 4
    %v152 = vor.u32 %v151, %v147
    %v153 = vrot.slane %v152, 4
    %v155 = vshll.u32 %v120, 16
    %v157 = vrot.slane %v155, 5
    %v158 = vsel %vm134, %v153, %v157
    %v160 = vshrl.u32 %v118, 16
    %v162 = vrot.slane %v160, 4
    %v163 = vshll.u32 %v118, 16
    %v165 = vrot.slane %v163, 5
    %v166 = vor.u32 %v162, %v165
    %v167 = vrot.slane %v166, 4
    %v169 = vshll.u32 %v119, 16
    %v171 = vrot.slane %v169, 5
    %v172 = vsel %vm134, %v167, %v171
    %v173 = vshrl.u32 %v119, 16
    %v175 = vrot.slane %v173, 4
    %v176 = vor.u32 %v175, %v171
    %v177 = vrot.slane %v176, 4
    %v179 = vshll.u32 %v121, 16
    %v181 = vrot.slane %v179, 5
    %v182 = vsel %vm134, %v177, %v181
    %v183 = vld [vmem:[#allocation3 + $0x20] sm:$0xf]
    %v184 = vld [vmem:[#allocation3 + $0x24] sm:$0xf]
    %v185 = vld [vmem:[#allocation3 + $0x28] sm:$0xf]
    %v186 = vld [vmem:[#allocation3 + $0x2c] sm:$0xf]
    %v187 = vld [vmem:[#allocation3 + $0x30] sm:$0xf]
    %v188 = vld [vmem:[#allocation3 + $0x34] sm:$0xf]
    %v189 = vld [vmem:[#allocation3 + $0x38] sm:$0xf]
    %v190 = vld [vmem:[#allocation3 + $0x3c] sm:$0xf]
    %v191 = vunpack.c.l.b16 %v148
    %v192 = vunpack.c.l.b16 %v158
    %v193 = vunpack.c.l.b16 %v172
    %v194 = vunpack.c.l.b16 %v182
    %v195 = vpack.c.b16 %v192, %v191
    %v196 = vpack.c.b16 %v194, %v193
    %v205 = vunpack.c.l.b16 %v183
    %v206 = vunpack.c.l.b16 %v184
    %v207 = vunpack.c.l.b16 %v185
    %v208 = vunpack.c.l.b16 %v186
    %v209 = vunpack.c.l.b16 %v187
    %v210 = vunpack.c.l.b16 %v188
    %v211 = vunpack.c.l.b16 %v189
    %v212 = vunpack.c.l.b16 %v190
    %v213 = vpack.c.b16 %v206, %v205
    %v214 = vpack.c.b16 %v208, %v207
    %v215 = vpack.c.b16 %v210, %v209
    %v216 = vpack.c.b16 %v212, %v211
    %vm221 = vcmask 523264
    %v223 = vsel %vm221, %v195, 0
    %v226 = vsel %vm221, %v196, 0
    %228 = vmatprep.subr.bf16.mxu0 0
    %229 = vmatpush1.bf16.msra.mxu0 0
    %230 = vmatprep.subr.bf16.mxu0 0
    %231 = vmatpush1.bf16.msra.mxu0 0
    %232 = vmatprep.subr.bf16.mxu0 0
    %233 = vmatpush1.bf16.msra.mxu0 0
    %234 = vmatprep.subr.bf16.mxu0 0
    %235 = vmatpush1.bf16.msra.mxu0 0
    %236 = vmatprep.subr.bf16.mxu0 0
    %237 = vmatpush1.bf16.msra.mxu0 %v216
    %238 = vmatprep.subr.bf16.mxu0 0
    %239 = vmatpush1.bf16.msra.mxu0 %v215
    %240 = vmatprep.subr.bf16.mxu0 0
    %241 = vmatpush1.bf16.msra.mxu0 %v214
    %242 = vmatprep.subr.bf16.mxu0 0
    %243 = vmatpush1.bf16.msra.mxu0 %v213
    %244 = vmatprep.subr.bf16.mxu0 0
    %245 = vmatpush2.bf16.msra.mxu0 0
    %246 = vmatprep.subr.bf16.mxu0 0
    %247 = vmatpush2.bf16.msra.mxu0 0
    %248 = vmatprep.subr.bf16.mxu0 0
    %249 = vmatpush2.bf16.msra.mxu0 0
    %250 = vmatprep.subr.bf16.mxu0 0
    %251 = vmatpush2.bf16.msra.mxu0 0
    %252 = vmatprep.subr.bf16.mxu0 0
    %253 = vmatpush2.bf16.msra.mxu0 0
    %254 = vmatprep.subr.bf16.mxu0 0
    %255 = vmatpush2.bf16.msra.mxu0 0
    %256 = vmatprep.subr.bf16.mxu0 0
    %257 = vmatpush2.bf16.msra.mxu0 0
    %258 = vmatprep.subr.bf16.mxu0 0
    %259 = vmatpush2.bf16.msra.mxu0 0
    %260 = vmatprep.mubr.bf16.mxu0 0
    %261 = vmatmul.mubr.bf16.gmra.mxu0 %v223
    %v262 = vpop.f32.mrf.mxu0
    %v263 = vadd.f32 0.0, %v262
    %v264 = vpop.f32.mrf.mxu0
    %v265 = vpop.f32.mrf.mxu0
    %v266 = vadd.f32 0.0, %v265
    %v267 = vpop.f32.mrf.mxu0
    %268 = vmatprep.mubr.bf16.mxu0 0
    %269 = vmatmul.mubr.bf16.gmra.mxu0 %v226
    %v270 = vpop.f32.mrf.mxu0
    %v271 = vadd.f32 0.0, %v270
    %v272 = vpop.f32.mrf.mxu0
    %v273 = vpop.f32.mrf.mxu0
    %v274 = vadd.f32 0.0, %v273
    %v275 = vpop.f32.mrf.mxu0
    %276 = vdwg.mxu0
    %v281 = vunpack.c.l.b16 %v116
    %v282 = vunpack.c.l.b16 %v117
    %v283 = vunpack.c.l.b16 %v118
    %v284 = vunpack.c.l.b16 %v119
    %v285 = vpack.c.b16 %v282, %v281
    %v286 = vpack.c.b16 %v284, %v283
    %v295 = vunpack.c.l.b16 %v124
    %v296 = vunpack.c.l.b16 %v125
    %v297 = vunpack.c.l.b16 %v126
    %v298 = vunpack.c.l.b16 %v127
    %v299 = vunpack.c.l.b16 %v128
    %v300 = vunpack.c.l.b16 %v129
    %v301 = vunpack.c.l.b16 %v130
    %v302 = vunpack.c.l.b16 %v131
    %v303 = vpack.c.b16 %v296, %v295
    %v304 = vpack.c.b16 %v298, %v297
    %v305 = vpack.c.b16 %v300, %v299
    %v306 = vpack.c.b16 %v302, %v301
    %v312 = vsel %vm221, %v285, 0
    %v315 = vsel %vm221, %v286, 0
    %317 = vmatprep.subr.bf16.mxu0 0
    %318 = vmatpush1.bf16.msra.mxu0 0
    %319 = vmatprep.subr.bf16.mxu0 0
    %320 = vmatpush1.bf16.msra.mxu0 0
    %321 = vmatprep.subr.bf16.mxu0 0
    %322 = vmatpush1.bf16.msra.mxu0 0
    %323 = vmatprep.subr.bf16.mxu0 0
    %324 = vmatpush1.bf16.msra.mxu0 0
    %325 = vmatprep.subr.bf16.mxu0 0
    %326 = vmatpush1.bf16.msra.mxu0 %v306
    %327 = vmatprep.subr.bf16.mxu0 0
    %328 = vmatpush1.bf16.msra.mxu0 %v305
    %329 = vmatprep.subr.bf16.mxu0 0
    %330 = vmatpush1.bf16.msra.mxu0 %v304
    %331 = vmatprep.subr.bf16.mxu0 0
    %332 = vmatpush1.bf16.msra.mxu0 %v303
    %333 = vmatprep.subr.bf16.mxu0 0
    %334 = vmatpush2.bf16.msra.mxu0 0
    %335 = vmatprep.subr.bf16.mxu0 0
    %336 = vmatpush2.bf16.msra.mxu0 0
    %337 = vmatprep.subr.bf16.mxu0 0
    %338 = vmatpush2.bf16.msra.mxu0 0
    %339 = vmatprep.subr.bf16.mxu0 0
    %340 = vmatpush2.bf16.msra.mxu0 0
    %341 = vmatprep.subr.bf16.mxu0 0
    %342 = vmatpush2.bf16.msra.mxu0 0
    %343 = vmatprep.subr.bf16.mxu0 0
    %344 = vmatpush2.bf16.msra.mxu0 0
    %345 = vmatprep.subr.bf16.mxu0 0
    %346 = vmatpush2.bf16.msra.mxu0 0
    %347 = vmatprep.subr.bf16.mxu0 0
    %348 = vmatpush2.bf16.msra.mxu0 0
    %349 = vmatprep.mubr.bf16.mxu0 0
    %350 = vmatmul.mubr.bf16.gmra.mxu0 %v312
    %v351 = vpop.f32.mrf.mxu0
    %v352 = vadd.f32 %v263, %v351
    %v353 = vpop.f32.mrf.mxu0
    %v354 = vpop.f32.mrf.mxu0
    %v355 = vadd.f32 %v266, %v354
    %v356 = vpop.f32.mrf.mxu0
    %357 = vmatprep.mubr.bf16.mxu0 0
    %358 = vmatmul.mubr.bf16.gmra.mxu0 %v315
    %v359 = vpop.f32.mrf.mxu0
    %v360 = vadd.f32 %v271, %v359
    %v361 = vpop.f32.mrf.mxu0
    %v362 = vpop.f32.mrf.mxu0
    %v363 = vadd.f32 %v274, %v362
    %v364 = vpop.f32.mrf.mxu0
    %365 = vdwg.mxu0
    %vm370 = vcmask 1042432
    %vm371 = vcmask 1046532
    %vm372 = vmor %vm370, %vm371
    %v373 = vrot.slane %v122, 5
    %v374 = vrot.slane %v373, 4
    %v375 = vrot.slane %v117, 5
    %v376 = vsel %vm372, %v374, %v375
    %v377 = vrot.slane %v375, 4
    %v378 = vrot.slane %v120, 5
    %v379 = vsel %vm372, %v377, %v378
    %v380 = vrot.slane %v123, 5
    %v381 = vrot.slane %v380, 4
    %v382 = vrot.slane %v119, 5
    %v383 = vsel %vm372, %v381, %v382
    %v384 = vrot.slane %v382, 4
    %v385 = vrot.slane %v121, 5
    %v386 = vsel %vm372, %v384, %v385
    %v387 = vld [vmem:[#allocation3 + $0x40] sm:$0xf]
    %v388 = vld [vmem:[#allocation3 + $0x44] sm:$0xf]
    %v389 = vld [vmem:[#allocation3 + $0x48] sm:$0xf]
    %v390 = vld [vmem:[#allocation3 + $0x4c] sm:$0xf]
    %v391 = vld [vmem:[#allocation3 + $0x50] sm:$0xf]
    %v392 = vld [vmem:[#allocation3 + $0x54] sm:$0xf]
    %v393 = vld [vmem:[#allocation3 + $0x58] sm:$0xf]
    %v394 = vld [vmem:[#allocation3 + $0x5c] sm:$0xf]
    %v395 = vunpack.c.l.b16 %v376
    %v396 = vunpack.c.l.b16 %v379
    %v397 = vunpack.c.l.b16 %v383
    %v398 = vunpack.c.l.b16 %v386
    %v399 = vpack.c.b16 %v396, %v395
    %v400 = vpack.c.b16 %v398, %v397
    %v409 = vunpack.c.l.b16 %v387
    %v410 = vunpack.c.l.b16 %v388
    %v411 = vunpack.c.l.b16 %v389
    %v412 = vunpack.c.l.b16 %v390
    %v413 = vunpack.c.l.b16 %v391
    %v414 = vunpack.c.l.b16 %v392
    %v415 = vunpack.c.l.b16 %v393
    %v416 = vunpack.c.l.b16 %v394
    %v417 = vpack.c.b16 %v410, %v409
    %v418 = vpack.c.b16 %v412, %v411
    %v419 = vpack.c.b16 %v414, %v413
    %v420 = vpack.c.b16 %v416, %v415
    %v426 = vsel %vm221, %v399, 0
    %v429 = vsel %vm221, %v400, 0
    %431 = vmatprep.subr.bf16.mxu0 0
    %432 = vmatpush1.bf16.msra.mxu0 0
    %433 = vmatprep.subr.bf16.mxu0 0
    %434 = vmatpush1.bf16.msra.mxu0 0
    %435 = vmatprep.subr.bf16.mxu0 0
    %436 = vmatpush1.bf16.msra.mxu0 0
    %437 = vmatprep.subr.bf16.mxu0 0
    %438 = vmatpush1.bf16.msra.mxu0 0
    %439 = vmatprep.subr.bf16.mxu0 0
    %440 = vmatpush1.bf16.msra.mxu0 %v420
    %441 = vmatprep.subr.bf16.mxu0 0
    %442 = vmatpush1.bf16.msra.mxu0 %v419
    %443 = vmatprep.subr.bf16.mxu0 0
    %444 = vmatpush1.bf16.msra.mxu0 %v418
    %445 = vmatprep.subr.bf16.mxu0 0
    %446 = vmatpush1.bf16.msra.mxu0 %v417
    %447 = vmatprep.subr.bf16.mxu0 0
    %448 = vmatpush2.bf16.msra.mxu0 0
    %449 = vmatprep.subr.bf16.mxu0 0
    %450 = vmatpush2.bf16.msra.mxu0 0
    %451 = vmatprep.subr.bf16.mxu0 0
    %452 = vmatpush2.bf16.msra.mxu0 0
    %453 = vmatprep.subr.bf16.mxu0 0
    %454 = vmatpush2.bf16.msra.mxu0 0
    %455 = vmatprep.subr.bf16.mxu0 0
    %456 = vmatpush2.bf16.msra.mxu0 0
    %457 = vmatprep.subr.bf16.mxu0 0
    %458 = vmatpush2.bf16.msra.mxu0 0
    %459 = vmatprep.subr.bf16.mxu0 0
    %460 = vmatpush2.bf16.msra.mxu0 0
    %461 = vmatprep.subr.bf16.mxu0 0
    %462 = vmatpush2.bf16.msra.mxu0 0
    %463 = vmatprep.mubr.bf16.mxu0 0
    %464 = vmatmul.mubr.bf16.gmra.mxu0 %v426
    %v465 = vpop.f32.mrf.mxu0
    %v466 = vadd.f32 0.0, %v465
    %v467 = vpop.f32.mrf.mxu0
    %v468 = vpop.f32.mrf.mxu0
    %v469 = vadd.f32 0.0, %v468
    %v470 = vpop.f32.mrf.mxu0
    %471 = vmatprep.mubr.bf16.mxu0 0
    %472 = vmatmul.mubr.bf16.gmra.mxu0 %v429
    %v473 = vpop.f32.mrf.mxu0
    %v474 = vadd.f32 0.0, %v473
    %v475 = vpop.f32.mrf.mxu0
    %v476 = vpop.f32.mrf.mxu0
    %v477 = vadd.f32 0.0, %v476
    %v478 = vpop.f32.mrf.mxu0
    %479 = vdwg.mxu0
    %v480 = vadd.f32 %v352, %v466
    %v481 = vadd.f32 %v355, %v469
    %v482 = vadd.f32 %v360, %v474
    %v483 = vadd.f32 %v363, %v477
    %v484 = vld [vmem:[%s2] sm:$0x1]
    %v486 = vlaneseq
    %v487 = vshrl.u32 %v486, 7
    %v488 = vsub.s32 0, %v487
    %v489 = vrot.slane %v484, %v488
    %v491 = vadd.f32 %v480, %v489
    %v492 = vadd.f32 %v481, %v489
    %v493 = vadd.f32 %v482, %v489
    %v494 = vadd.f32 %v483, %v489
    %v495 = vmax.f32 %v491, 0.0
    %v496 = vmax.f32 %v492, 0.0
    %v497 = vmax.f32 %v493, 0.0
    %v498 = vmax.f32 %v494, 0.0
    %499 = vrot.lane.b32.xlu0 %v495, 120
    %v500 = vpop.permute.xlu0 %499
    %501 = vrot.lane.b32.xlu0 %v496, 120
    %v502 = vpop.permute.xlu0 %501
    %503 = vrot.lane.b32.xlu0 %v497, 120
    %v504 = vpop.permute.xlu0 %503
    %505 = vrot.lane.b32.xlu0 %v498, 120
    %v506 = vpop.permute.xlu0 %505
    %v507 = vmax.f32 %v495, %v500
    %v508 = vmax.f32 %v496, %v502
    %v509 = vmax.f32 %v497, %v504
    %v510 = vmax.f32 %v498, %v506
    %v511 = vpack.c.bf16 %v508, %v507
    %v512 = vpack.c.bf16 %v510, %v509
    %v513 = vld [vmem:[%s3] sm:$0xf]
    %v514 = vld [vmem:[%s3 + $0x4] sm:$0xf]
    %v517 = vunpack.c.l.b16 %v513
    %v518 = vunpack.c.l.b16 %v514
    %v519 = vpack.c.b16 %v518, %v517
    %vm520 = vcmask 261120
    %v522 = vsel %vm520, %v519, 0
    %524 = vmatprep.subr.bf16.mxu0 0
    %525 = vmatpush1.bf16.msra.mxu0 0
    %526 = vmatprep.subr.bf16.mxu0 0
    %527 = vmatpush1.bf16.msra.mxu0 0
    %528 = vmatprep.subr.bf16.mxu0 0
    %529 = vmatpush1.bf16.msra.mxu0 0
    %530 = vmatprep.subr.bf16.mxu0 0
    %531 = vmatpush1.bf16.msra.mxu0 0
    %532 = vmatprep.subr.bf16.mxu0 0
    %533 = vmatpush1.bf16.msra.mxu0 0
    %534 = vmatprep.subr.bf16.mxu0 0
    %535 = vmatpush1.bf16.msra.mxu0 0
    %536 = vmatprep.subr.bf16.mxu0 0
    %537 = vmatpush1.bf16.msra.mxu0 %v512
    %538 = vmatprep.subr.bf16.mxu0 0
    %539 = vmatpush1.bf16.msra.mxu0 %v511
    %540 = vmatprep.subr.bf16.mxu0 0
    %541 = vmatpush2.bf16.msra.mxu0 0
    %542 = vmatprep.subr.bf16.mxu0 0
    %543 = vmatpush2.bf16.msra.mxu0 0
    %544 = vmatprep.subr.bf16.mxu0 0
    %545 = vmatpush2.bf16.msra.mxu0 0
    %546 = vmatprep.subr.bf16.mxu0 0
    %547 = vmatpush2.bf16.msra.mxu0 0
    %548 = vmatprep.subr.bf16.mxu0 0
    %549 = vmatpush2.bf16.msra.mxu0 0
    %550 = vmatprep.subr.bf16.mxu0 0
    %551 = vmatpush2.bf16.msra.mxu0 0
    %552 = vmatprep.subr.bf16.mxu0 0
    %553 = vmatpush2.bf16.msra.mxu0 0
    %554 = vmatprep.subr.bf16.mxu0 0
    %555 = vmatpush2.bf16.msra.mxu0 0
    %556 = vmatprep.mubr.bf16.mxu0 0
    %557 = vmatmul.mubr.bf16.gmra.mxu0 %v522
    %v558 = vpop.f32.mrf.mxu0
    %v559 = vadd.f32 0.0, %v558
    %v560 = vpop.f32.mrf.mxu0
    %v561 = vpop.f32.mrf.mxu0
    %v562 = vadd.f32 0.0, %v561
    %v563 = vpop.f32.mrf.mxu0
    %564 = vdwg.mxu0
    %v565 = vld [vmem:[%s4] sm:$0xf]
    %v566 = vld [vmem:[%s4 + $0x4] sm:$0xf]
    %v569 = vunpack.c.l.b16 %v565
    %v570 = vunpack.c.l.b16 %v566
    %v571 = vpack.c.b16 %v570, %v569
    %v573 = vsel %vm520, %v571, 0
    %575 = vmatprep.subr.bf16.mxu0 0
    %576 = vmatpush1.bf16.msra.mxu0 0
    %577 = vmatprep.subr.bf16.mxu0 0
    %578 = vmatpush1.bf16.msra.mxu0 0
    %579 = vmatprep.subr.bf16.mxu0 0
    %580 = vmatpush1.bf16.msra.mxu0 0
    %581 = vmatprep.subr.bf16.mxu0 0
    %582 = vmatpush1.bf16.msra.mxu0 0
    %583 = vmatprep.subr.bf16.mxu0 0
    %584 = vmatpush1.bf16.msra.mxu0 0
    %585 = vmatprep.subr.bf16.mxu0 0
    %586 = vmatpush1.bf16.msra.mxu0 0
    %587 = vmatprep.subr.bf16.mxu0 0
    %588 = vmatpush1.bf16.msra.mxu0 %v512
    %589 = vmatprep.subr.bf16.mxu0 0
    %590 = vmatpush1.bf16.msra.mxu0 %v511
    %591 = vmatprep.subr.bf16.mxu0 0
    %592 = vmatpush2.bf16.msra.mxu0 0
    %593 = vmatprep.subr.bf16.mxu0 0
    %594 = vmatpush2.bf16.msra.mxu0 0
    %595 = vmatprep.subr.bf16.mxu0 0
    %596 = vmatpush2.bf16.msra.mxu0 0
    %597 = vmatprep.subr.bf16.mxu0 0
    %598 = vmatpush2.bf16.msra.mxu0 0
    %599 = vmatprep.subr.bf16.mxu0 0
    %600 = vmatpush2.bf16.msra.mxu0 0
    %601 = vmatprep.subr.bf16.mxu0 0
    %602 = vmatpush2.bf16.msra.mxu0 0
    %603 = vmatprep.subr.bf16.mxu0 0
    %604 = vmatpush2.bf16.msra.mxu0 0
    %605 = vmatprep.subr.bf16.mxu0 0
    %606 = vmatpush2.bf16.msra.mxu0 0
    %607 = vmatprep.mubr.bf16.mxu0 0
    %608 = vmatmul.mubr.bf16.gmra.mxu0 %v573
    %v609 = vpop.f32.mrf.mxu0
    %v610 = vadd.f32 0.0, %v609
    %v611 = vpop.f32.mrf.mxu0
    %v612 = vpop.f32.mrf.mxu0
    %v613 = vadd.f32 0.0, %v612
    %v614 = vpop.f32.mrf.mxu0
    %615 = vdwg.mxu0
    %v616 = vmax.f32 %v559, %v610
    %v617 = vmax.f32 %v562, %v613
    %v618 = vpack.c.bf16 %v617, %v616
    %v620 = vunpack.c.l.b16 %v618
    %v621 = vunpack.c.h.b16 %v618
    %v622 = vpack.c.b16 %v620, %v620
    %v623 = vpack.c.b16 %v621, %v621
    %v625 = vshrl.u32 %v622, 16
    %v627 = vrot.slane %v625, 7
    %v628 = vshll.u32 %v622, 16
    %v630 = vor.u32 %v627, %v628
    %v631 = vrot.slane %v627, 4
    %v633 = vshrl.u32 %v623, 16
    %v635 = vrot.slane %v633, 7
    %v636 = vshll.u32 %v623, 16
    %v638 = vor.u32 %v635, %v636
    %v639 = vrot.slane %v635, 4
    %vm644 = vcmask 1043456
    %vm645 = vmand %vm644, %vm108
    %v646 = vld [vmem:[#allocation2] sm:$0xf]
    %v647 = vsel %vm645, %v630, %v646
    %648 = vst [vmem:[#allocation2] sm:$0xf] %v647
    %v649 = vld [vmem:[#allocation2 + $0x4] sm:$0x1]
    %v650 = vsel %vm101, %v631, %v649
    %651 = vst [vmem:[#allocation2 + $0x4] sm:$0x1] %v650
    %v652 = vld [vmem:[#allocation2 + $0x8] sm:$0xf]
    %v653 = vsel %vm645, %v638, %v652
    %654 = vst [vmem:[#allocation2 + $0x8] sm:$0xf] %v653
    %v655 = vld [vmem:[#allocation2 + $0xc] sm:$0x1]
    %v656 = vsel %vm101, %v639, %v655
    %657 = vst [vmem:[#allocation2 + $0xc] sm:$0x1] %v656
    %v658 = vld [vmem:[#allocation2] sm:$0xf]
    %v659 = vld [vmem:[#allocation2 + $0x8] sm:$0xf]
    %v660 = vld [vmem:[#allocation2 + $0x4] sm:$0x1]
    %v661 = vld [vmem:[#allocation2 + $0xc] sm:$0x1]
    %v662 = vld [vmem:[#allocation2] sm:$0xe]
    %v663 = vld [vmem:[#allocation2 + $0x8] sm:$0xe]
    %v668 = vunpack.c.l.b16 %v658
    %v669 = vunpack.c.l.b16 %v660
    %v670 = vunpack.c.l.b16 %v659
    %v671 = vunpack.c.l.b16 %v661
    %v672 = vpack.c.b16 %v669, %v668
    %v673 = vpack.c.b16 %v671, %v670
    %v675 = vshrl.u32 %v672, 16
    %v677 = vshll.u32 %v672, 16
    %v679 = vrot.slane %v677, 1
    %v680 = vor.u32 %v675, %v679
    %v682 = vshrl.u32 %v673, 16
    %v684 = vshll.u32 %v673, 16
    %v686 = vrot.slane %v684, 1
    %v687 = vor.u32 %v682, %v686
    %v690 = vunpack.c.l.b16 %v662
    %v691 = vunpack.c.l.b16 %v663
    %v692 = vpack.c.b16 %v669, %v690
    %v693 = vpack.c.b16 %v671, %v691
    %v694 = vrot.slane %v692, 1
    %v695 = vrot.slane %v693, 1
    %v696 = vunpack.c.l.b16 %v680
    %v697 = vunpack.c.l.b16 %v694
    %v698 = vunpack.c.l.b16 %v687
    %v699 = vunpack.c.l.b16 %v695
    %v700 = vld [vmem:[%s5] sm:$0xf]
    %v701 = vld [vmem:[%s5 + $0x4] sm:$0xf]
    %v702 = vld [vmem:[%s5 + $0x8] sm:$0xf]
    %v703 = vld [vmem:[%s5 + $0xc] sm:$0xf]
    %v704 = vld [vmem:[%s5 + $0x10] sm:$0xf]
    %v705 = vld [vmem:[%s5 + $0x14] sm:$0xf]
    %v706 = vld [vmem:[%s5 + $0x18] sm:$0xf]
    %v707 = vld [vmem:[%s5 + $0x1c] sm:$0xf]
    %v708 = vld [vmem:[%s5 + $0x20] sm:$0xf]
    %v709 = vld [vmem:[%s5 + $0x24] sm:$0xf]
    %v710 = vld [vmem:[%s5 + $0x28] sm:$0xf]
    %v711 = vld [vmem:[%s5 + $0x2c] sm:$0xf]
    %v712 = vld [vmem:[%s5 + $0x30] sm:$0xf]
    %v713 = vld [vmem:[%s5 + $0x34] sm:$0xf]
    %v714 = vld [vmem:[%s5 + $0x38] sm:$0xf]
    %v715 = vld [vmem:[%s5 + $0x3c] sm:$0xf]
    %v716 = vld [vmem:[%s5 + $0x40] sm:$0xf]
    %v717 = vld [vmem:[%s5 + $0x44] sm:$0xf]
    %v718 = vld [vmem:[%s5 + $0x48] sm:$0xf]
    %v719 = vld [vmem:[%s5 + $0x4c] sm:$0xf]
    %v720 = vld [vmem:[%s5 + $0x50] sm:$0xf]
    %v721 = vld [vmem:[%s5 + $0x54] sm:$0xf]
    %v722 = vld [vmem:[%s5 + $0x58] sm:$0xf]
    %v723 = vld [vmem:[%s5 + $0x5c] sm:$0xf]
    %v724 = vld [vmem:[%s5 + $0x60] sm:$0xf]
    %v725 = vld [vmem:[%s5 + $0x64] sm:$0xf]
    %v726 = vld [vmem:[%s5 + $0x68] sm:$0xf]
    %v727 = vld [vmem:[%s5 + $0x6c] sm:$0xf]
    %v728 = vld [vmem:[%s5 + $0x70] sm:$0xf]
    %v729 = vld [vmem:[%s5 + $0x74] sm:$0xf]
    %v730 = vld [vmem:[%s5 + $0x78] sm:$0xf]
    %v731 = vld [vmem:[%s5 + $0x7c] sm:$0xf]
    %v732 = vld [vmem:[%s5 + $0x80] sm:$0xf]
    %v733 = vld [vmem:[%s5 + $0x84] sm:$0xf]
    %v734 = vld [vmem:[%s5 + $0x88] sm:$0xf]
    %v735 = vld [vmem:[%s5 + $0x8c] sm:$0xf]
    %v736 = vld [vmem:[%s5 + $0x90] sm:$0xf]
    %v737 = vld [vmem:[%s5 + $0x94] sm:$0xf]
    %v738 = vld [vmem:[%s5 + $0x98] sm:$0xf]
    %v739 = vld [vmem:[%s5 + $0x9c] sm:$0xf]
    %v740 = vld [vmem:[%s5 + $0xa0] sm:$0xf]
    %v741 = vld [vmem:[%s5 + $0xa4] sm:$0xf]
    %v742 = vld [vmem:[%s5 + $0xa8] sm:$0xf]
    %v743 = vld [vmem:[%s5 + $0xac] sm:$0xf]
    %v744 = vld [vmem:[%s5 + $0xb0] sm:$0xf]
    %v745 = vld [vmem:[%s5 + $0xb4] sm:$0xf]
    %v746 = vld [vmem:[%s5 + $0xb8] sm:$0xf]
    %v747 = vld [vmem:[%s5 + $0xbc] sm:$0xf]
    %v748 = vld [vmem:[%s6] sm:$0x1]
    %v750 = vlaneseq
    %v751 = vshrl.u32 %v750, 7
    %v752 = vsub.s32 0, %v751
    %v753 = vrot.slane %v748, %v752
    %v755 = vpack.c.b16 %v670, %v668
    %v756 = vpack.c.b16 %v698, %v696
    %v757 = vpack.c.b16 %v699, %v697
    %v809 = vunpack.c.l.b16 %v700
    %v810 = vunpack.c.l.b16 %v701
    %v811 = vunpack.c.l.b16 %v702
    %v812 = vunpack.c.l.b16 %v703
    %v813 = vunpack.c.l.b16 %v704
    %v814 = vunpack.c.l.b16 %v705
    %v815 = vunpack.c.l.b16 %v706
    %v816 = vunpack.c.l.b16 %v707
    %v817 = vunpack.c.l.b16 %v708
    %v818 = vunpack.c.l.b16 %v709
    %v819 = vunpack.c.l.b16 %v710
    %v820 = vunpack.c.l.b16 %v711
    %v821 = vunpack.c.l.b16 %v712
    %v822 = vunpack.c.l.b16 %v713
    %v823 = vunpack.c.l.b16 %v714
    %v824 = vunpack.c.l.b16 %v715
    %v825 = vunpack.c.l.b16 %v716
    %v826 = vunpack.c.l.b16 %v717
    %v827 = vunpack.c.l.b16 %v718
    %v828 = vunpack.c.l.b16 %v719
    %v829 = vunpack.c.l.b16 %v720
    %v830 = vunpack.c.l.b16 %v721
    %v831 = vunpack.c.l.b16 %v722
    %v832 = vunpack.c.l.b16 %v723
    %v833 = vunpack.c.l.b16 %v724
    %v834 = vunpack.c.l.b16 %v725
    %v835 = vunpack.c.l.b16 %v726
    %v836 = vunpack.c.l.b16 %v727
    %v837 = vunpack.c.l.b16 %v728
    %v838 = vunpack.c.l.b16 %v729
    %v839 = vunpack.c.l.b16 %v730
    %v840 = vunpack.c.l.b16 %v731
    %v841 = vunpack.c.l.b16 %v732
    %v842 = vunpack.c.l.b16 %v733
    %v843 = vunpack.c.l.b16 %v734
    %v844 = vunpack.c.l.b16 %v735
    %v845 = vunpack.c.l.b16 %v736
    %v846 = vunpack.c.l.b16 %v737
    %v847 = vunpack.c.l.b16 %v738
    %v848 = vunpack.c.l.b16 %v739
    %v849 = vunpack.c.l.b16 %v740
    %v850 = vunpack.c.l.b16 %v741
    %v851 = vunpack.c.l.b16 %v742
    %v852 = vunpack.c.l.b16 %v743
    %v853 = vunpack.c.l.b16 %v744
    %v854 = vunpack.c.l.b16 %v745
    %v855 = vunpack.c.l.b16 %v746
    %v856 = vunpack.c.l.b16 %v747
    %v857 = vpack.c.b16 %v810, %v809
    %v858 = vpack.c.b16 %v812, %v811
    %v859 = vpack.c.b16 %v814, %v813
    %v860 = vpack.c.b16 %v816, %v815
    %v861 = vpack.c.b16 %v818, %v817
    %v862 = vpack.c.b16 %v820, %v819
    %v863 = vpack.c.b16 %v822, %v821
    %v864 = vpack.c.b16 %v824, %v823
    %v865 = vpack.c.b16 %v826, %v825
    %v866 = vpack.c.b16 %v828, %v827
    %v867 = vpack.c.b16 %v830, %v829
    %v868 = vpack.c.b16 %v832, %v831
    %v869 = vpack.c.b16 %v834, %v833
    %v870 = vpack.c.b16 %v836, %v835
    %v871 = vpack.c.b16 %v838, %v837
    %v872 = vpack.c.b16 %v840, %v839
    %v873 = vpack.c.b16 %v842, %v841
    %v874 = vpack.c.b16 %v844, %v843
    %v875 = vpack.c.b16 %v846, %v845
    %v876 = vpack.c.b16 %v848, %v847
    %v877 = vpack.c.b16 %v850, %v849
    %v878 = vpack.c.b16 %v852, %v851
    %v879 = vpack.c.b16 %v854, %v853
    %v880 = vpack.c.b16 %v856, %v855
    %905 = vmatprep.subr.bf16.mxu0 0
    %906 = vmatpush1.bf16.msra.mxu0 %v864
    %907 = vmatprep.subr.bf16.mxu0 0
    %908 = vmatpush1.bf16.msra.mxu0 %v863
    %909 = vmatprep.subr.bf16.mxu0 0
    %910 = vmatpush1.bf16.msra.mxu0 %v862
    %911 = vmatprep.subr.bf16.mxu0 0
    %912 = vmatpush1.bf16.msra.mxu0 %v861
    %913 = vmatprep.subr.bf16.mxu0 0
    %914 = vmatpush1.bf16.msra.mxu0 %v860
    %915 = vmatprep.subr.bf16.mxu0 0
    %916 = vmatpush1.bf16.msra.mxu0 %v859
    %917 = vmatprep.subr.bf16.mxu0 0
    %918 = vmatpush1.bf16.msra.mxu0 %v858
    %919 = vmatprep.subr.bf16.mxu0 0
    %920 = vmatpush1.bf16.msra.mxu0 %v857
    %921 = vmatprep.subr.bf16.mxu0 0
    %922 = vmatpush2.bf16.msra.mxu0 %v872
    %923 = vmatprep.subr.bf16.mxu0 0
    %924 = vmatpush2.bf16.msra.mxu0 %v871
    %925 = vmatprep.subr.bf16.mxu0 0
    %926 = vmatpush2.bf16.msra.mxu0 %v870
    %927 = vmatprep.subr.bf16.mxu0 0
    %928 = vmatpush2.bf16.msra.mxu0 %v869
    %929 = vmatprep.subr.bf16.mxu0 0
    %930 = vmatpush2.bf16.msra.mxu0 %v868
    %931 = vmatprep.subr.bf16.mxu0 0
    %932 = vmatpush2.bf16.msra.mxu0 %v867
    %933 = vmatprep.subr.bf16.mxu0 0
    %934 = vmatpush2.bf16.msra.mxu0 %v866
    %935 = vmatprep.subr.bf16.mxu0 0
    %936 = vmatpush2.bf16.msra.mxu0 %v865
    %937 = vmatprep.mubr.bf16.mxu0 %v756
    %938 = vmatmul.mubr.bf16.gmra.mxu0 %v755
    %v939 = vpop.f32.mrf.mxu0
    %v940 = vadd.f32 %v753, %v939
    %v941 = vpop.f32.mrf.mxu0
    %v942 = vpop.f32.mrf.mxu0
    %v943 = vadd.f32 %v753, %v942
    %v944 = vpop.f32.mrf.mxu0
    %945 = vdwg.mxu0
    %946 = vmatprep.subr.bf16.mxu0 0
    %947 = vmatpush1.bf16.msra.mxu0 %v880
    %948 = vmatprep.subr.bf16.mxu0 0
    %949 = vmatpush1.bf16.msra.mxu0 %v879
    %950 = vmatprep.subr.bf16.mxu0 0
    %951 = vmatpush1.bf16.msra.mxu0 %v878
    %952 = vmatprep.subr.bf16.mxu0 0
    %953 = vmatpush1.bf16.msra.mxu0 %v877
    %954 = vmatprep.subr.bf16.mxu0 0
    %955 = vmatpush1.bf16.msra.mxu0 %v876
    %956 = vmatprep.subr.bf16.mxu0 0
    %957 = vmatpush1.bf16.msra.mxu0 %v875
    %958 = vmatprep.subr.bf16.mxu0 0
    %959 = vmatpush1.bf16.msra.mxu0 %v874
    %960 = vmatprep.subr.bf16.mxu0 0
    %961 = vmatpush1.bf16.msra.mxu0 %v873
    %962 = vmatprep.subr.bf16.mxu0 0
    %963 = vmatpush2.bf16.msra.mxu0 0
    %964 = vmatprep.subr.bf16.mxu0 0
    %965 = vmatpush2.bf16.msra.mxu0 0
    %966 = vmatprep.subr.bf16.mxu0 0
    %967 = vmatpush2.bf16.msra.mxu0 0
    %968 = vmatprep.subr.bf16.mxu0 0
    %969 = vmatpush2.bf16.msra.mxu0 0
    %970 = vmatprep.subr.bf16.mxu0 0
    %971 = vmatpush2.bf16.msra.mxu0 0
    %972 = vmatprep.subr.bf16.mxu0 0
    %973 = vmatpush2.bf16.msra.mxu0 0
    %974 = vmatprep.subr.bf16.mxu0 0
    %975 = vmatpush2.bf16.msra.mxu0 0
    %976 = vmatprep.subr.bf16.mxu0 0
    %977 = vmatpush2.bf16.msra.mxu0 0
    %978 = vmatprep.mubr.bf16.mxu0 0
    %979 = vmatmul.mubr.bf16.gmra.mxu0 %v757
    %v980 = vpop.f32.mrf.mxu0
    %v981 = vadd.f32 %v940, %v980
    %v982 = vpop.f32.mrf.mxu0
    %v983 = vpop.f32.mrf.mxu0
    %v984 = vadd.f32 %v943, %v983
    %v985 = vpop.f32.mrf.mxu0
    %986 = vdwg.mxu0
    %v987 = vmax.f32 %v981, 0.0
    %v988 = vmax.f32 %v984, 0.0
    %989 = vrot.lane.b32.xlu0 %v987, 112
    %v990 = vpop.permute.xlu0 %989
    %991 = vrot.lane.b32.xlu0 %v988, 112
    %v992 = vpop.permute.xlu0 %991
    %v993 = vmax.f32 %v987, %v990
    %v994 = vmax.f32 %v988, %v992
    %v995 = vpack.c.bf16 %v994, %v993
    %v996 = vld [vmem:[%s7] sm:$0xf]
    %vm997 = vcmask 130048
    %v999 = vsel %vm997, %v996, 0
    %1001 = vmatprep.subr.bf16.mxu0 0
    %1002 = vmatpush1.bf16.msra.mxu0 0
    %1003 = vmatprep.subr.bf16.mxu0 0
    %1004 = vmatpush1.bf16.msra.mxu0 0
    %1005 = vmatprep.subr.bf16.mxu0 0
    %1006 = vmatpush1.bf16.msra.mxu0 0
    %1007 = vmatprep.subr.bf16.mxu0 0
    %1008 = vmatpush1.bf16.msra.mxu0 0
    %1009 = vmatprep.subr.bf16.mxu0 0
    %1010 = vmatpush1.bf16.msra.mxu0 0
    %1011 = vmatprep.subr.bf16.mxu0 0
    %1012 = vmatpush1.bf16.msra.mxu0 0
    %1013 = vmatprep.subr.bf16.mxu0 0
    %1014 = vmatpush1.bf16.msra.mxu0 0
    %1015 = vmatprep.subr.bf16.mxu0 0
    %1016 = vmatpush1.bf16.msra.mxu0 %v995
    %1017 = vmatprep.subr.bf16.mxu0 0
    %1018 = vmatpush2.bf16.msra.mxu0 0
    %1019 = vmatprep.subr.bf16.mxu0 0
    %1020 = vmatpush2.bf16.msra.mxu0 0
    %1021 = vmatprep.subr.bf16.mxu0 0
    %1022 = vmatpush2.bf16.msra.mxu0 0
    %1023 = vmatprep.subr.bf16.mxu0 0
    %1024 = vmatpush2.bf16.msra.mxu0 0
    %1025 = vmatprep.subr.bf16.mxu0 0
    %1026 = vmatpush2.bf16.msra.mxu0 0
    %1027 = vmatprep.subr.bf16.mxu0 0
    %1028 = vmatpush2.bf16.msra.mxu0 0
    %1029 = vmatprep.subr.bf16.mxu0 0
    %1030 = vmatpush2.bf16.msra.mxu0 0
    %1031 = vmatprep.subr.bf16.mxu0 0
    %1032 = vmatpush2.bf16.msra.mxu0 0
    %1033 = vmatprep.mubr.bf16.mxu0 0
    %1034 = vmatmul.mubr.bf16.gmra.mxu0 %v999
    %v1035 = vpop.f32.mrf.mxu0
    %v1036 = vadd.f32 0.0, %v1035
    %v1037 = vpop.f32.mrf.mxu0
    %v1038 = vpop.f32.mrf.mxu0
    %v1039 = vpop.f32.mrf.mxu0
    %1040 = vdwg.mxu0
    %v1041 = vld [vmem:[%s8] sm:$0xf]
    %v1043 = vsel %vm997, %v1041, 0
    %1045 = vmatprep.subr.bf16.mxu0 0
    %1046 = vmatpush1.bf16.msra.mxu0 0
    %1047 = vmatprep.subr.bf16.mxu0 0
    %1048 = vmatpush1.bf16.msra.mxu0 0
    %1049 = vmatprep.subr.bf16.mxu0 0
    %1050 = vmatpush1.bf16.msra.mxu0 0
    %1051 = vmatprep.subr.bf16.mxu0 0
    %1052 = vmatpush1.bf16.msra.mxu0 0
    %1053 = vmatprep.subr.bf16.mxu0 0
    %1054 = vmatpush1.bf16.msra.mxu0 0
    %1055 = vmatprep.subr.bf16.mxu0 0
    %1056 = vmatpush1.bf16.msra.mxu0 0
    %1057 = vmatprep.subr.bf16.mxu0 0
    %1058 = vmatpush1.bf16.msra.mxu0 0
    %1059 = vmatprep.subr.bf16.mxu0 0
    %1060 = vmatpush1.bf16.msra.mxu0 %v995
    %1061 = vmatprep.subr.bf16.mxu0 0
    %1062 = vmatpush2.bf16.msra.mxu0 0
    %1063 = vmatprep.subr.bf16.mxu0 0
    %1064 = vmatpush2.bf16.msra.mxu0 0
    %1065 = vmatprep.subr.bf16.mxu0 0
    %1066 = vmatpush2.bf16.msra.mxu0 0
    %1067 = vmatprep.subr.bf16.mxu0 0
    %1068 = vmatpush2.bf16.msra.mxu0 0
    %1069 = vmatprep.subr.bf16.mxu0 0
    %1070 = vmatpush2.bf16.msra.mxu0 0
    %1071 = vmatprep.subr.bf16.mxu0 0
    %1072 = vmatpush2.bf16.msra.mxu0 0
    %1073 = vmatprep.subr.bf16.mxu0 0
    %1074 = vmatpush2.bf16.msra.mxu0 0
    %1075 = vmatprep.subr.bf16.mxu0 0
    %1076 = vmatpush2.bf16.msra.mxu0 0
    %1077 = vmatprep.mubr.bf16.mxu0 0
    %1078 = vmatmul.mubr.bf16.gmra.mxu0 %v1043
    %v1079 = vpop.f32.mrf.mxu0
    %v1080 = vadd.f32 0.0, %v1079
    %v1081 = vpop.f32.mrf.mxu0
    %v1082 = vpop.f32.mrf.mxu0
    %v1083 = vpop.f32.mrf.mxu0
    %1084 = vdwg.mxu0
    %v1085 = vmax.f32 %v1036, %v1080
    %v1086 = vpack.c.bf16 %v1085, %v1085
    %v1088 = vshrl.u32 %v1086, 16
    %v1092 = vrot.slane %v1086, 1
    %v1094 = vrot.slane %v1088, 1
    %v1096 = vshll.u32 %v1086, 16
    %v1098 = vrot.slane %v1096, 2
    %v1100 = vshll.u32 %v1088, 16
    %v1102 = vrot.slane %v1100, 2
    %v1104 = vshll.u32 %v1092, 16
    %v1106 = vrot.slane %v1104, 2
    %v1108 = vshll.u32 %v1094, 16
    %v1110 = vrot.slane %v1108, 2
    %v1115 = vsel %vm101, %v1086, %v1098
    %v1116 = vsel %vm101, %v1088, %v1102
    %v1117 = vsel %vm101, %v1092, %v1106
    %v1118 = vsel %vm101, %v1094, %v1110
    %v1119 = vld [vmem:[%s9] sm:$0xf]
    %v1120 = vld [vmem:[%s9 + $0x4] sm:$0xf]
    %v1121 = vld [vmem:[%s9 + $0x8] sm:$0xf]
    %v1122 = vld [vmem:[%s9 + $0xc] sm:$0xf]
    %v1123 = vld [vmem:[%s9 + $0x10] sm:$0xf]
    %v1124 = vld [vmem:[%s9 + $0x14] sm:$0xf]
    %v1125 = vld [vmem:[%s9 + $0x18] sm:$0xf]
    %v1126 = vld [vmem:[%s9 + $0x1c] sm:$0xf]
    %v1127 = vld [vmem:[%s9 + $0x20] sm:$0xf]
    %v1128 = vld [vmem:[%s9 + $0x24] sm:$0xf]
    %v1129 = vld [vmem:[%s9 + $0x28] sm:$0xf]
    %v1130 = vld [vmem:[%s9 + $0x2c] sm:$0xf]
    %v1131 = vld [vmem:[%s9 + $0x30] sm:$0xf]
    %v1132 = vld [vmem:[%s9 + $0x34] sm:$0xf]
    %v1133 = vld [vmem:[%s9 + $0x38] sm:$0xf]
    %v1134 = vld [vmem:[%s9 + $0x3c] sm:$0xf]
    %v1135 = vld [vmem:[%s9 + $0x40] sm:$0xf]
    %v1136 = vld [vmem:[%s9 + $0x44] sm:$0xf]
    %v1137 = vld [vmem:[%s9 + $0x48] sm:$0xf]
    %v1138 = vld [vmem:[%s9 + $0x4c] sm:$0xf]
    %v1139 = vld [vmem:[%s9 + $0x50] sm:$0xf]
    %v1140 = vld [vmem:[%s9 + $0x54] sm:$0xf]
    %v1141 = vld [vmem:[%s9 + $0x58] sm:$0xf]
    %v1142 = vld [vmem:[%s9 + $0x5c] sm:$0xf]
    %v1143 = vld [vmem:[%s9 + $0x60] sm:$0xf]
    %v1144 = vld [vmem:[%s9 + $0x64] sm:$0xf]
    %v1145 = vld [vmem:[%s9 + $0x68] sm:$0xf]
    %v1146 = vld [vmem:[%s9 + $0x6c] sm:$0xf]
    %v1147 = vld [vmem:[%s9 + $0x70] sm:$0xf]
    %v1148 = vld [vmem:[%s9 + $0x74] sm:$0xf]
    %v1149 = vld [vmem:[%s9 + $0x78] sm:$0xf]
    %v1150 = vld [vmem:[%s9 + $0x7c] sm:$0xf]
    %v1151 = vld [vmem:[%s9 + $0x80] sm:$0xf]
    %v1152 = vld [vmem:[%s9 + $0x84] sm:$0xf]
    %v1153 = vld [vmem:[%s9 + $0x88] sm:$0xf]
    %v1154 = vld [vmem:[%s9 + $0x8c] sm:$0xf]
    %v1155 = vld [vmem:[%s9 + $0x90] sm:$0xf]
    %v1156 = vld [vmem:[%s9 + $0x94] sm:$0xf]
    %v1157 = vld [vmem:[%s9 + $0x98] sm:$0xf]
    %v1158 = vld [vmem:[%s9 + $0x9c] sm:$0xf]
    %v1159 = vld [vmem:[%s9 + $0xa0] sm:$0xf]
    %v1160 = vld [vmem:[%s9 + $0xa4] sm:$0xf]
    %v1161 = vld [vmem:[%s9 + $0xa8] sm:$0xf]
    %v1162 = vld [vmem:[%s9 + $0xac] sm:$0xf]
    %v1163 = vld [vmem:[%s9 + $0xb0] sm:$0xf]
    %v1164 = vld [vmem:[%s9 + $0xb4] sm:$0xf]
    %v1165 = vld [vmem:[%s9 + $0xb8] sm:$0xf]
    %v1166 = vld [vmem:[%s9 + $0xbc] sm:$0xf]
    %v1167 = vld [vmem:[%s9 + $0xc0] sm:$0xf]
    %v1168 = vld [vmem:[%s9 + $0xc4] sm:$0xf]
    %v1169 = vld [vmem:[%s9 + $0xc8] sm:$0xf]
    %v1170 = vld [vmem:[%s9 + $0xcc] sm:$0xf]
    %v1171 = vld [vmem:[%s9 + $0xd0] sm:$0xf]
    %v1172 = vld [vmem:[%s9 + $0xd4] sm:$0xf]
    %v1173 = vld [vmem:[%s9 + $0xd8] sm:$0xf]
    %v1174 = vld [vmem:[%s9 + $0xdc] sm:$0xf]
    %v1175 = vld [vmem:[%s9 + $0xe0] sm:$0xf]
    %v1176 = vld [vmem:[%s9 + $0xe4] sm:$0xf]
    %v1177 = vld [vmem:[%s9 + $0xe8] sm:$0xf]
    %v1178 = vld [vmem:[%s9 + $0xec] sm:$0xf]
    %v1179 = vld [vmem:[%s9 + $0xf0] sm:$0xf]
    %v1180 = vld [vmem:[%s9 + $0xf4] sm:$0xf]
    %v1181 = vld [vmem:[%s9 + $0xf8] sm:$0xf]
    %v1182 = vld [vmem:[%s9 + $0xfc] sm:$0xf]
    %v1183 = vld [vmem:[%s10] sm:$0x1]
    %v1185 = vlaneseq
    %v1186 = vshrl.u32 %v1185, 7
    %v1187 = vsub.s32 0, %v1186
    %v1188 = vrot.slane %v1183, %v1187
    %v1254 = vunpack.c.l.b16 %v1119
    %v1255 = vunpack.c.l.b16 %v1120
    %v1256 = vunpack.c.l.b16 %v1121
    %v1257 = vunpack.c.l.b16 %v1122
    %v1258 = vunpack.c.l.b16 %v1123
    %v1259 = vunpack.c.l.b16 %v1124
    %v1260 = vunpack.c.l.b16 %v1125
    %v1261 = vunpack.c.l.b16 %v1126
    %v1262 = vunpack.c.l.b16 %v1127
    %v1263 = vunpack.c.l.b16 %v1128
    %v1264 = vunpack.c.l.b16 %v1129
    %v1265 = vunpack.c.l.b16 %v1130
    %v1266 = vunpack.c.l.b16 %v1131
    %v1267 = vunpack.c.l.b16 %v1132
    %v1268 = vunpack.c.l.b16 %v1133
    %v1269 = vunpack.c.l.b16 %v1134
    %v1270 = vunpack.c.l.b16 %v1135
    %v1271 = vunpack.c.l.b16 %v1136
    %v1272 = vunpack.c.l.b16 %v1137
    %v1273 = vunpack.c.l.b16 %v1138
    %v1274 = vunpack.c.l.b16 %v1139
    %v1275 = vunpack.c.l.b16 %v1140
    %v1276 = vunpack.c.l.b16 %v1141
    %v1277 = vunpack.c.l.b16 %v1142
    %v1278 = vunpack.c.l.b16 %v1143
    %v1279 = vunpack.c.l.b16 %v1144
    %v1280 = vunpack.c.l.b16 %v1145
    %v1281 = vunpack.c.l.b16 %v1146
    %v1282 = vunpack.c.l.b16 %v1147
    %v1283 = vunpack.c.l.b16 %v1148
    %v1284 = vunpack.c.l.b16 %v1149
    %v1285 = vunpack.c.l.b16 %v1150
    %v1286 = vunpack.c.l.b16 %v1151
    %v1287 = vunpack.c.l.b16 %v1152
    %v1288 = vunpack.c.l.b16 %v1153
    %v1289 = vunpack.c.l.b16 %v1154
    %v1290 = vunpack.c.l.b16 %v1155
    %v1291 = vunpack.c.l.b16 %v1156
    %v1292 = vunpack.c.l.b16 %v1157
    %v1293 = vunpack.c.l.b16 %v1158
    %v1294 = vunpack.c.l.b16 %v1159
    %v1295 = vunpack.c.l.b16 %v1160
    %v1296 = vunpack.c.l.b16 %v1161
    %v1297 = vunpack.c.l.b16 %v1162
    %v1298 = vunpack.c.l.b16 %v1163
    %v1299 = vunpack.c.l.b16 %v1164
    %v1300 = vunpack.c.l.b16 %v1165
    %v1301 = vunpack.c.l.b16 %v1166
    %v1302 = vunpack.c.l.b16 %v1167
    %v1303 = vunpack.c.l.b16 %v1168
    %v1304 = vunpack.c.l.b16 %v1169
    %v1305 = vunpack.c.l.b16 %v1170
    %v1306 = vunpack.c.l.b16 %v1171
    %v1307 = vunpack.c.l.b16 %v1172
    %v1308 = vunpack.c.l.b16 %v1173
    %v1309 = vunpack.c.l.b16 %v1174
    %v1310 = vunpack.c.l.b16 %v1175
    %v1311 = vunpack.c.l.b16 %v1176
    %v1312 = vunpack.c.l.b16 %v1177
    %v1313 = vunpack.c.l.b16 %v1178
    %v1314 = vunpack.c.l.b16 %v1179
    %v1315 = vunpack.c.l.b16 %v1180
    %v1316 = vunpack.c.l.b16 %v1181
    %v1317 = vunpack.c.l.b16 %v1182
    %v1318 = vpack.c.b16 %v1255, %v1254
    %v1319 = vpack.c.b16 %v1257, %v1256
    %v1320 = vpack.c.b16 %v1259, %v1258
    %v1321 = vpack.c.b16 %v1261, %v1260
    %v1322 = vpack.c.b16 %v1263, %v1262
    %v1323 = vpack.c.b16 %v1265, %v1264
    %v1324 = vpack.c.b16 %v1267, %v1266
    %v1325 = vpack.c.b16 %v1269, %v1268
    %v1326 = vpack.c.b16 %v1271, %v1270
    %v1327 = vpack.c.b16 %v1273, %v1272
    %v1328 = vpack.c.b16 %v1275, %v1274
    %v1329 = vpack.c.b16 %v1277, %v1276
    %v1330 = vpack.c.b16 %v1279, %v1278
    %v1331 = vpack.c.b16 %v1281, %v1280
    %v1332 = vpack.c.b16 %v1283, %v1282
    %v1333 = vpack.c.b16 %v1285, %v1284
    %v1334 = vpack.c.b16 %v1287, %v1286
    %v1335 = vpack.c.b16 %v1289, %v1288
    %v1336 = vpack.c.b16 %v1291, %v1290
    %v1337 = vpack.c.b16 %v1293, %v1292
    %v1338 = vpack.c.b16 %v1295, %v1294
    %v1339 = vpack.c.b16 %v1297, %v1296
    %v1340 = vpack.c.b16 %v1299, %v1298
    %v1341 = vpack.c.b16 %v1301, %v1300
    %v1342 = vpack.c.b16 %v1303, %v1302
    %v1343 = vpack.c.b16 %v1305, %v1304
    %v1344 = vpack.c.b16 %v1307, %v1306
    %v1345 = vpack.c.b16 %v1309, %v1308
    %v1346 = vpack.c.b16 %v1311, %v1310
    %v1347 = vpack.c.b16 %v1313, %v1312
    %v1348 = vpack.c.b16 %v1315, %v1314
    %v1349 = vpack.c.b16 %v1317, %v1316
    %1382 = vmatprep.subr.bf16.mxu0 0
    %1383 = vmatpush1.bf16.msra.mxu0 %v1325
    %1384 = vmatprep.subr.bf16.mxu0 0
    %1385 = vmatpush1.bf16.msra.mxu0 %v1324
    %1386 = vmatprep.subr.bf16.mxu0 0
    %1387 = vmatpush1.bf16.msra.mxu0 %v1323
    %1388 = vmatprep.subr.bf16.mxu0 0
    %1389 = vmatpush1.bf16.msra.mxu0 %v1322
    %1390 = vmatprep.subr.bf16.mxu0 0
    %1391 = vmatpush1.bf16.msra.mxu0 %v1321
    %1392 = vmatprep.subr.bf16.mxu0 0
    %1393 = vmatpush1.bf16.msra.mxu0 %v1320
    %1394 = vmatprep.subr.bf16.mxu0 0
    %1395 = vmatpush1.bf16.msra.mxu0 %v1319
    %1396 = vmatprep.subr.bf16.mxu0 0
    %1397 = vmatpush1.bf16.msra.mxu0 %v1318
    %1398 = vmatprep.subr.bf16.mxu0 0
    %1399 = vmatpush2.bf16.msra.mxu0 %v1333
    %1400 = vmatprep.subr.bf16.mxu0 0
    %1401 = vmatpush2.bf16.msra.mxu0 %v1332
    %1402 = vmatprep.subr.bf16.mxu0 0
    %1403 = vmatpush2.bf16.msra.mxu0 %v1331
    %1404 = vmatprep.subr.bf16.mxu0 0
    %1405 = vmatpush2.bf16.msra.mxu0 %v1330
    %1406 = vmatprep.subr.bf16.mxu0 0
    %1407 = vmatpush2.bf16.msra.mxu0 %v1329
    %1408 = vmatprep.subr.bf16.mxu0 0
    %1409 = vmatpush2.bf16.msra.mxu0 %v1328
    %1410 = vmatprep.subr.bf16.mxu0 0
    %1411 = vmatpush2.bf16.msra.mxu0 %v1327
    %1412 = vmatprep.subr.bf16.mxu0 0
    %1413 = vmatpush2.bf16.msra.mxu0 %v1326
    %1414 = vmatprep.mubr.bf16.mxu0 %v1116
    %1415 = vmatmul.mubr.bf16.gmra.mxu0 %v1115
    %v1416 = vpop.f32.mrf.mxu0
    %v1417 = vadd.f32 %v1188, %v1416
    %v1418 = vpop.f32.mrf.mxu0
    %v1419 = vpop.f32.mrf.mxu0
    %v1420 = vpop.f32.mrf.mxu0
    %1421 = vdwg.mxu0
    %1422 = vmatprep.subr.bf16.mxu0 0
    %1423 = vmatpush1.bf16.msra.mxu0 %v1341
    %1424 = vmatprep.subr.bf16.mxu0 0
    %1425 = vmatpush1.bf16.msra.mxu0 %v1340
    %1426 = vmatprep.subr.bf16.mxu0 0
    %1427 = vmatpush1.bf16.msra.mxu0 %v1339
    %1428 = vmatprep.subr.bf16.mxu0 0
    %1429 = vmatpush1.bf16.msra.mxu0 %v1338
    %1430 = vmatprep.subr.bf16.mxu0 0
    %1431 = vmatpush1.bf16.msra.mxu0 %v1337
    %1432 = vmatprep.subr.bf16.mxu0 0
    %1433 = vmatpush1.bf16.msra.mxu0 %v1336
    %1434 = vmatprep.subr.bf16.mxu0 0
    %1435 = vmatpush1.bf16.msra.mxu0 %v1335
    %1436 = vmatprep.subr.bf16.mxu0 0
    %1437 = vmatpush1.bf16.msra.mxu0 %v1334
    %1438 = vmatprep.subr.bf16.mxu0 0
    %1439 = vmatpush2.bf16.msra.mxu0 %v1349
    %1440 = vmatprep.subr.bf16.mxu0 0
    %1441 = vmatpush2.bf16.msra.mxu0 %v1348
    %1442 = vmatprep.subr.bf16.mxu0 0
    %1443 = vmatpush2.bf16.msra.mxu0 %v1347
    %1444 = vmatprep.subr.bf16.mxu0 0
    %1445 = vmatpush2.bf16.msra.mxu0 %v1346
    %1446 = vmatprep.subr.bf16.mxu0 0
    %1447 = vmatpush2.bf16.msra.mxu0 %v1345
    %1448 = vmatprep.subr.bf16.mxu0 0
    %1449 = vmatpush2.bf16.msra.mxu0 %v1344
    %1450 = vmatprep.subr.bf16.mxu0 0
    %1451 = vmatpush2.bf16.msra.mxu0 %v1343
    %1452 = vmatprep.subr.bf16.mxu0 0
    %1453 = vmatpush2.bf16.msra.mxu0 %v1342
    %1454 = vmatprep.mubr.bf16.mxu0 %v1118
    %1455 = vmatmul.mubr.bf16.gmra.mxu0 %v1117
    %v1456 = vpop.f32.mrf.mxu0
    %v1457 = vadd.f32 %v1417, %v1456
    %v1458 = vpop.f32.mrf.mxu0
    %v1459 = vpop.f32.mrf.mxu0
    %v1460 = vpop.f32.mrf.mxu0
    %1461 = vdwg.mxu0
    %v1462 = vmax.f32 %v1457, 0.0
    %v1463 = vpack.c.bf16 %v1462, %v1462
    %v1464 = vld [vmem:[%s11] sm:$0xf]
    %v1465 = vld [vmem:[%s11 + $0x4] sm:$0xf]
    %v1466 = vld [vmem:[%s11 + $0x8] sm:$0xf]
    %v1467 = vld [vmem:[%s11 + $0xc] sm:$0xf]
    %v1468 = vld [vmem:[%s11 + $0x10] sm:$0xf]
    %v1469 = vld [vmem:[%s11 + $0x14] sm:$0xf]
    %v1470 = vld [vmem:[%s11 + $0x18] sm:$0xf]
    %v1471 = vld [vmem:[%s11 + $0x1c] sm:$0xf]
    %v1472 = vld [vmem:[%s11 + $0x20] sm:$0xf]
    %v1473 = vld [vmem:[%s11 + $0x24] sm:$0xf]
    %v1474 = vld [vmem:[%s11 + $0x28] sm:$0xf]
    %v1475 = vld [vmem:[%s11 + $0x2c] sm:$0xf]
    %v1476 = vld [vmem:[%s11 + $0x30] sm:$0xf]
    %v1477 = vld [vmem:[%s11 + $0x34] sm:$0xf]
    %v1478 = vld [vmem:[%s11 + $0x38] sm:$0xf]
    %v1479 = vld [vmem:[%s11 + $0x3c] sm:$0xf]
    %v1480 = vld [vmem:[%s12] sm:$0x1]
    %v1482 = vlaneseq
    %v1483 = vshrl.u32 %v1482, 7
    %v1484 = vsub.s32 0, %v1483
    %v1485 = vrot.slane %v1480, %v1484
    %v1503 = vunpack.c.l.b16 %v1464
    %v1504 = vunpack.c.l.b16 %v1465
    %v1505 = vunpack.c.l.b16 %v1466
    %v1506 = vunpack.c.l.b16 %v1467
    %v1507 = vunpack.c.l.b16 %v1468
    %v1508 = vunpack.c.l.b16 %v1469
    %v1509 = vunpack.c.l.b16 %v1470
    %v1510 = vunpack.c.l.b16 %v1471
    %v1511 = vunpack.c.l.b16 %v1472
    %v1512 = vunpack.c.l.b16 %v1473
    %v1513 = vunpack.c.l.b16 %v1474
    %v1514 = vunpack.c.l.b16 %v1475
    %v1515 = vunpack.c.l.b16 %v1476
    %v1516 = vunpack.c.l.b16 %v1477
    %v1517 = vunpack.c.l.b16 %v1478
    %v1518 = vunpack.c.l.b16 %v1479
    %v1519 = vpack.c.b16 %v1504, %v1503
    %v1520 = vpack.c.b16 %v1506, %v1505
    %v1521 = vpack.c.b16 %v1508, %v1507
    %v1522 = vpack.c.b16 %v1510, %v1509
    %v1523 = vpack.c.b16 %v1512, %v1511
    %v1524 = vpack.c.b16 %v1514, %v1513
    %v1525 = vpack.c.b16 %v1516, %v1515
    %v1526 = vpack.c.b16 %v1518, %v1517
    %1535 = vmatprep.subr.bf16.mxu0 0
    %1536 = vmatpush1.bf16.msra.mxu0 %v1526
    %1537 = vmatprep.subr.bf16.mxu0 0
    %1538 = vmatpush1.bf16.msra.mxu0 %v1525
    %1539 = vmatprep.subr.bf16.mxu0 0
    %1540 = vmatpush1.bf16.msra.mxu0 %v1524
    %1541 = vmatprep.subr.bf16.mxu0 0
    %1542 = vmatpush1.bf16.msra.mxu0 %v1523
    %1543 = vmatprep.subr.bf16.mxu0 0
    %1544 = vmatpush1.bf16.msra.mxu0 %v1522
    %1545 = vmatprep.subr.bf16.mxu0 0
    %1546 = vmatpush1.bf16.msra.mxu0 %v1521
    %1547 = vmatprep.subr.bf16.mxu0 0
    %1548 = vmatpush1.bf16.msra.mxu0 %v1520
    %1549 = vmatprep.subr.bf16.mxu0 0
    %1550 = vmatpush1.bf16.msra.mxu0 %v1519
    %1551 = vmatprep.subr.bf16.mxu0 0
    %1552 = vmatpush2.bf16.msra.mxu0 0
    %1553 = vmatprep.subr.bf16.mxu0 0
    %1554 = vmatpush2.bf16.msra.mxu0 0
    %1555 = vmatprep.subr.bf16.mxu0 0
    %1556 = vmatpush2.bf16.msra.mxu0 0
    %1557 = vmatprep.subr.bf16.mxu0 0
    %1558 = vmatpush2.bf16.msra.mxu0 0
    %1559 = vmatprep.subr.bf16.mxu0 0
    %1560 = vmatpush2.bf16.msra.mxu0 0
    %1561 = vmatprep.subr.bf16.mxu0 0
    %1562 = vmatpush2.bf16.msra.mxu0 0
    %1563 = vmatprep.subr.bf16.mxu0 0
    %1564 = vmatpush2.bf16.msra.mxu0 0
    %1565 = vmatprep.subr.bf16.mxu0 0
    %1566 = vmatpush2.bf16.msra.mxu0 0
    %1567 = vmatprep.mubr.bf16.mxu0 0
    %1568 = vmatmul.mubr.bf16.gmra.mxu0 %v1463
    %v1569 = vpop.f32.mrf.mxu0
    %v1570 = vadd.f32 %v1485, %v1569
    %v1571 = vpop.f32.mrf.mxu0
    %v1572 = vpop.f32.mrf.mxu0
    %v1573 = vpop.f32.mrf.mxu0
    %1574 = vdwg.mxu0
    %v1575 = vmax.f32 %v1570, 0.0
    %v1576 = vpack.c.bf16 %v1575, %v1575
    %v1577 = vld [vmem:[#allocation6] sm:$0xf]
    %v1578 = vld [vmem:[#allocation6 + $0x4] sm:$0xf]
    %v1579 = vld [vmem:[#allocation6 + $0x8] sm:$0xf]
    %v1580 = vld [vmem:[#allocation6 + $0xc] sm:$0xf]
    %v1581 = vld [vmem:[#allocation6 + $0x10] sm:$0xf]
    %v1582 = vld [vmem:[#allocation6 + $0x14] sm:$0xf]
    %v1583 = vld [vmem:[#allocation6 + $0x18] sm:$0xf]
    %v1584 = vld [vmem:[#allocation6 + $0x1c] sm:$0xf]
    %v1585 = vld [vmem:[#allocation6 + $0x20] sm:$0xf]
    %v1586 = vld [vmem:[#allocation6 + $0x24] sm:$0xf]
    %v1587 = vld [vmem:[#allocation6 + $0x28] sm:$0xf]
    %v1588 = vld [vmem:[#allocation6 + $0x2c] sm:$0xf]
    %v1589 = vld [vmem:[#allocation6 + $0x30] sm:$0xf]
    %v1590 = vld [vmem:[#allocation6 + $0x34] sm:$0xf]
    %v1591 = vld [vmem:[#allocation6 + $0x38] sm:$0xf]
    %v1592 = vld [vmem:[#allocation6 + $0x3c] sm:$0xf]
    %v1593 = vld [vmem:[%s14] sm:$0x1]
    %v1595 = vlaneseq
    %v1596 = vshrl.u32 %v1595, 7
    %v1597 = vsub.s32 0, %v1596
    %v1598 = vrot.slane %v1593, %v1597
    %v1616 = vunpack.c.l.b16 %v1577
    %v1617 = vunpack.c.l.b16 %v1578
    %v1618 = vunpack.c.l.b16 %v1579
    %v1619 = vunpack.c.l.b16 %v1580
    %v1620 = vunpack.c.l.b16 %v1581
    %v1621 = vunpack.c.l.b16 %v1582
    %v1622 = vunpack.c.l.b16 %v1583
    %v1623 = vunpack.c.l.b16 %v1584
    %v1624 = vunpack.c.l.b16 %v1585
    %v1625 = vunpack.c.l.b16 %v1586
    %v1626 = vunpack.c.l.b16 %v1587
    %v1627 = vunpack.c.l.b16 %v1588
    %v1628 = vunpack.c.l.b16 %v1589
    %v1629 = vunpack.c.l.b16 %v1590
    %v1630 = vunpack.c.l.b16 %v1591
    %v1631 = vunpack.c.l.b16 %v1592
    %v1632 = vpack.c.b16 %v1617, %v1616
    %v1633 = vpack.c.b16 %v1619, %v1618
    %v1634 = vpack.c.b16 %v1621, %v1620
    %v1635 = vpack.c.b16 %v1623, %v1622
    %v1636 = vpack.c.b16 %v1625, %v1624
    %v1637 = vpack.c.b16 %v1627, %v1626
    %v1638 = vpack.c.b16 %v1629, %v1628
    %v1639 = vpack.c.b16 %v1631, %v1630
    %1648 = vmatprep.subr.bf16.mxu0 0
    %1649 = vmatpush1.bf16.msra.mxu0 %v1639
    %1650 = vmatprep.subr.bf16.mxu0 0
    %1651 = vmatpush1.bf16.msra.mxu0 %v1638
    %1652 = vmatprep.subr.bf16.mxu0 0
    %1653 = vmatpush1.bf16.msra.mxu0 %v1637
    %1654 = vmatprep.subr.bf16.mxu0 0
    %1655 = vmatpush1.bf16.msra.mxu0 %v1636
    %1656 = vmatprep.subr.bf16.mxu0 0
    %1657 = vmatpush1.bf16.msra.mxu0 %v1635
    %1658 = vmatprep.subr.bf16.mxu0 0
    %1659 = vmatpush1.bf16.msra.mxu0 %v1634
    %1660 = vmatprep.subr.bf16.mxu0 0
    %1661 = vmatpush1.bf16.msra.mxu0 %v1633
    %1662 = vmatprep.subr.bf16.mxu0 0
    %1663 = vmatpush1.bf16.msra.mxu0 %v1632
    %1664 = vmatprep.subr.bf16.mxu0 0
    %1665 = vmatpush2.bf16.msra.mxu0 0
    %1666 = vmatprep.subr.bf16.mxu0 0
    %1667 = vmatpush2.bf16.msra.mxu0 0
    %1668 = vmatprep.subr.bf16.mxu0 0
    %1669 = vmatpush2.bf16.msra.mxu0 0
    %1670 = vmatprep.subr.bf16.mxu0 0
    %1671 = vmatpush2.bf16.msra.mxu0 0
    %1672 = vmatprep.subr.bf16.mxu0 0
    %1673 = vmatpush2.bf16.msra.mxu0 0
    %1674 = vmatprep.subr.bf16.mxu0 0
    %1675 = vmatpush2.bf16.msra.mxu0 0
    %1676 = vmatprep.subr.bf16.mxu0 0
    %1677 = vmatpush2.bf16.msra.mxu0 0
    %1678 = vmatprep.subr.bf16.mxu0 0
    %1679 = vmatpush2.bf16.msra.mxu0 0
    %1680 = vmatprep.mubr.bf16.mxu0 0
    %1681 = vmatmul.mubr.bf16.gmra.mxu0 %v1576
    %v1682 = vpop.f32.mrf.mxu0
    %v1683 = vadd.f32 %v1598, %v1682
    %v1684 = vpop.f32.mrf.mxu0
    %v1685 = vpop.f32.mrf.mxu0
    %v1686 = vpop.f32.mrf.mxu0
    %1687 = vdwg.mxu0
    %v1688 = vmax.f32 %v1683, 0.0
    %v1689 = vpack.c.bf16 %v1688, %v1688
    %v1690 = vld [vmem:[#allocation8] sm:$0xf]
    %v1691 = vld [vmem:[#allocation8 + $0x4] sm:$0xf]
    %v1692 = vld [vmem:[#allocation8 + $0x8] sm:$0xf]
    %v1693 = vld [vmem:[#allocation8 + $0xc] sm:$0xf]
    %v1694 = vld [vmem:[#allocation8 + $0x10] sm:$0xf]
    %v1695 = vld [vmem:[#allocation8 + $0x14] sm:$0xf]
    %v1696 = vld [vmem:[#allocation8 + $0x18] sm:$0xf]
    %v1697 = vld [vmem:[#allocation8 + $0x1c] sm:$0xf]
    %v1698 = vld [vmem:[#allocation8 + $0x20] sm:$0xf]
    %v1699 = vld [vmem:[#allocation8 + $0x24] sm:$0xf]
    %v1700 = vld [vmem:[#allocation8 + $0x28] sm:$0xf]
    %v1701 = vld [vmem:[#allocation8 + $0x2c] sm:$0xf]
    %v1702 = vld [vmem:[#allocation8 + $0x30] sm:$0xf]
    %v1703 = vld [vmem:[#allocation8 + $0x34] sm:$0xf]
    %v1704 = vld [vmem:[#allocation8 + $0x38] sm:$0xf]
    %v1705 = vld [vmem:[#allocation8 + $0x3c] sm:$0xf]
    %v1706 = vld [vmem:[%s16] sm:$0x1]
    %v1708 = vlaneseq
    %v1709 = vshrl.u32 %v1708, 7
    %v1710 = vsub.s32 0, %v1709
    %v1711 = vrot.slane %v1706, %v1710
    %v1729 = vunpack.c.l.b16 %v1690
    %v1730 = vunpack.c.l.b16 %v1691
    %v1731 = vunpack.c.l.b16 %v1692
    %v1732 = vunpack.c.l.b16 %v1693
    %v1733 = vunpack.c.l.b16 %v1694
    %v1734 = vunpack.c.l.b16 %v1695
    %v1735 = vunpack.c.l.b16 %v1696
    %v1736 = vunpack.c.l.b16 %v1697
    %v1737 = vunpack.c.l.b16 %v1698
    %v1738 = vunpack.c.l.b16 %v1699
    %v1739 = vunpack.c.l.b16 %v1700
    %v1740 = vunpack.c.l.b16 %v1701
    %v1741 = vunpack.c.l.b16 %v1702
    %v1742 = vunpack.c.l.b16 %v1703
    %v1743 = vunpack.c.l.b16 %v1704
    %v1744 = vunpack.c.l.b16 %v1705
    %v1745 = vpack.c.b16 %v1730, %v1729
    %v1746 = vpack.c.b16 %v1732, %v1731
    %v1747 = vpack.c.b16 %v1734, %v1733
    %v1748 = vpack.c.b16 %v1736, %v1735
    %v1749 = vpack.c.b16 %v1738, %v1737
    %v1750 = vpack.c.b16 %v1740, %v1739
    %v1751 = vpack.c.b16 %v1742, %v1741
    %v1752 = vpack.c.b16 %v1744, %v1743
    %1761 = vmatprep.subr.bf16.mxu0 0
    %1762 = vmatpush1.bf16.msra.mxu0 %v1752
    %1763 = vmatprep.subr.bf16.mxu0 0
    %1764 = vmatpush1.bf16.msra.mxu0 %v1751
    %1765 = vmatprep.subr.bf16.mxu0 0
    %1766 = vmatpush1.bf16.msra.mxu0 %v1750
    %1767 = vmatprep.subr.bf16.mxu0 0
    %1768 = vmatpush1.bf16.msra.mxu0 %v1749
    %1769 = vmatprep.subr.bf16.mxu0 0
    %1770 = vmatpush1.bf16.msra.mxu0 %v1748
    %1771 = vmatprep.subr.bf16.mxu0 0
    %1772 = vmatpush1.bf16.msra.mxu0 %v1747
    %1773 = vmatprep.subr.bf16.mxu0 0
    %1774 = vmatpush1.bf16.msra.mxu0 %v1746
    %1775 = vmatprep.subr.bf16.mxu0 0
    %1776 = vmatpush1.bf16.msra.mxu0 %v1745
    %1777 = vmatprep.subr.bf16.mxu0 0
    %1778 = vmatpush2.bf16.msra.mxu0 0
    %1779 = vmatprep.subr.bf16.mxu0 0
    %1780 = vmatpush2.bf16.msra.mxu0 0
    %1781 = vmatprep.subr.bf16.mxu0 0
    %1782 = vmatpush2.bf16.msra.mxu0 0
    %1783 = vmatprep.subr.bf16.mxu0 0
    %1784 = vmatpush2.bf16.msra.mxu0 0
    %1785 = vmatprep.subr.bf16.mxu0 0
    %1786 = vmatpush2.bf16.msra.mxu0 0
    %1787 = vmatprep.subr.bf16.mxu0 0
    %1788 = vmatpush2.bf16.msra.mxu0 0
    %1789 = vmatprep.subr.bf16.mxu0 0
    %1790 = vmatpush2.bf16.msra.mxu0 0
    %1791 = vmatprep.subr.bf16.mxu0 0
    %1792 = vmatpush2.bf16.msra.mxu0 0
    %1793 = vmatprep.mubr.bf16.mxu0 0
    %1794 = vmatmul.mubr.bf16.gmra.mxu0 %v1689
    %v1795 = vpop.f32.mrf.mxu0
    %v1796 = vadd.f32 %v1711, %v1795
    %v1797 = vpop.f32.mrf.mxu0
    %v1798 = vpop.f32.mrf.mxu0
    %v1799 = vpop.f32.mrf.mxu0
    %1800 = vdwg.mxu0
    %v1801 = vtanh.pop %v1796
    %v1802 = vmul.f32 %v1801, 2.0
    %1803 = vst [vmem:[#allocation9] sm:$0x3] %v1802
    // Predicated region
    $region82: #{_run.1} parent=1 // pred_check
      _
    $region83: #{_run.1} parent=1 // pred_check_branch
      %1805 = sbr.rel (0) target = $region85
    $region84: #{_run.1} parent=1 // pred_region
      %s1807 = ssub.s32 32, 32
      %1808 = vsyncadd [#allocation5], %s1807
      %s1810 = sshll.u32 [#allocation9], 4
      %s1811 = int_to_ptr.vmem [resolvable:$true] %s1810
      %1813 = dma.vmem_to_hbm [thread:$0]  %s1811, 32, %s17, [#allocation5]
    $region85: #{_run.1} parent=1 // pred_fallthru
      _
    // Predicated region
    $region86: #{_run.1} parent=1 // pred_check
      _
    $region87: #{_run.1} parent=1 // pred_check_branch
      %1815 = sbr.rel (0) target = $region89
    $region88: #{_run.1} parent=1 // pred_region
      %1816 = dma.done [#allocation5], 32
    $region89: #{_run.1} parent=1 // pred_fallthru
      _
    %1817 = vsyncpa [#allocation4], 1
    %1818 = vsyncpa [#allocation7], 1
    %1819 = vsyncpa [#allocation5], 1

</llo_original>
